<compile_context>
chip_gen: v7x
topology: tpu7x:2x2x1
jax: 0.10.0
libtpu: 0.0.40
codegen_flags: <defaults>
</compile_context>

<pallas_src>
import functools
import math

import jax
import jax.numpy as jnp
from jax.experimental import pallas as pl
from jax.experimental.pallas import tpu as pltpu


# ----------------------------------------------------------------------------
# Config (small synthetic sizes, lane-friendly; structure follows RespLLM.__init__)
# ----------------------------------------------------------------------------
class Config:
    n_cls = 4             # configs.n_cls
    d_ff = 16             # configs.d_ff
    llm_dim = 128         # stand-in configs.llm_dim (real LLaMA-7B: 4096)
    enc_dim = 128         # stand-in configs.enc_dim (real operaCT: 768)
    enc_hidden = 128      # stand-in encoder MLP hidden
    mlp_dim = 256         # stand-in LLaMA MLP hidden
    patch_nums = 1        # patch_nums == 1 branch of forward()
    head_dropout = 0.0    # eval mode -> identity
    use_audio = True
    vocab = 50            # stand-in tokenizer vocab
    n_cls_pad = 128       # lane-padded head output width (sliced in wrapper)


CFG = Config()
CFG.head_nf = CFG.d_ff * CFG.patch_nums


# ----------------------------------------------------------------------------
# Single fused forward kernel
#   audio encoder (stand-in) -> aligner -> [prompt|context|audio] concat ->
#   LLaMA-style decoder layer (pre-RMSNorm attn + SwiGLU MLP + final norm) ->
#   patch_nums==1 head slice -> FlattenHead linear
# ----------------------------------------------------------------------------
def _respllm_fused_kernel(x_spec_ref, tok_emb_ref,
                          enc_w1_ref, enc_b1_ref, enc_w2_ref, enc_b2_ref,
                          align_w_ref, align_b_ref,
                          wqkv_ref, wo_ref, w_gu_ref, w_down_ref,
                          rms1_ref, rms2_ref, rmsf_ref,
                          head_w_ref, head_b_ref,
                          out_ref, flat_ref,
                          seq_ref,                     # VMEM scratch (B, S, D)
                          *, scale, d_llm, mlp_dim, d_ff):
    f32 = jnp.float32
    D = d_llm

    # ---- audio encoder stand-in (frozen operaCT): time mean-pool + 2-layer MLP ----
    # TODO(synk): real pretrained operaCT (HTS-AT transformer) encoder not replicated.
    pooled = jnp.mean(x_spec_ref[...], axis=1)                                  # (B, F)
    h = jnp.dot(pooled, enc_w1_ref[...], preferred_element_type=f32) + enc_b1_ref[...]
    h = jax.nn.gelu(h)   # tanh-approx GELU (PyTorch nn.GELU is exact erf); stand-in encoder
    x_enc = jnp.dot(h, enc_w2_ref[...], preferred_element_type=f32) + enc_b2_ref[...]

    # ---- aligner: nn.Linear(d_audio, d_llm) ----
    enc_out = jnp.dot(x_enc, align_w_ref[...], preferred_element_type=f32) + align_b_ref[...]

    # ---- cat([prompt_emb, context_emb, enc_out.unsqueeze(1)], dim=1) via VMEM scratch ----
    B, L, _ = tok_emb_ref.shape
    S = L + 1
    seq_ref[:, :L, :] = tok_emb_ref[...]
    seq_ref[:, L:S, :] = enc_out[:, None, :]
    x2 = seq_ref[...].reshape(B * S, D)                                         # (B*S, D)

    def rmsnorm(t, w_ref_):
        var = jnp.mean(t * t, axis=-1, keepdims=True)
        return t * jax.lax.rsqrt(var + 1e-6) * w_ref_[...]

    # ---- LLaMA-style decoder layer (stand-in for LlamaModel.last_hidden_state) ----
    # TODO(synk): RoPE, multi-head split and the 32 layers of real LLaMA-7B not replicated.
    h1 = rmsnorm(x2, rms1_ref)
    qkv = jnp.dot(h1, wqkv_ref[...], preferred_element_type=f32).reshape(B, S, 3 * D)
    q = qkv[:, :, :D]
    k = qkv[:, :, D:2 * D]
    v = qkv[:, :, 2 * D:]

    s = jnp.einsum("bqd,bkd->bqk", q, k, preferred_element_type=f32) * scale    # (B, S, S)
    row = jax.lax.broadcasted_iota(jnp.int32, (B, S, S), 1)
    col = jax.lax.broadcasted_iota(jnp.int32, (B, S, S), 2)
    s = jnp.where(col <= row, s, -1e30)            # finite mask: no inf-inf NaN hazard
    s = s - jnp.max(s, axis=-1, keepdims=True)
    p = jnp.exp(s)
    p = p * pl.reciprocal(jnp.sum(p, axis=-1, keepdims=True), approx=True)
    attn = jnp.einsum("bqk,bkd->bqd", p, v, preferred_element_type=f32)         # (B, S, D)
    x2 = x2 + jnp.dot(attn.reshape(B * S, D), wo_ref[...], preferred_element_type=f32)

    h2 = rmsnorm(x2, rms2_ref)
    gu = jnp.dot(h2, w_gu_ref[...], preferred_element_type=f32)                 # (B*S, 2M)
    m = jax.nn.silu(gu[:, :mlp_dim]) * gu[:, mlp_dim:]
    x2 = x2 + jnp.dot(m, w_down_ref[...], preferred_element_type=f32)

    dec = rmsnorm(x2, rmsf_ref).reshape(B, S, D)       # == .last_hidden_state

    # ---- dec[:, :, :d_ff].permute(0,2,1)[:, :, -1:] + Flatten  ==  dec[:, -1, :d_ff] ----
    flat = dec[:, S - 1, :d_ff]                                                 # (B, d_ff)
    flat_ref[...] = flat.astype(flat_ref.dtype)

    # ---- FlattenHead linear (128-lane padded output, sliced in wrapper; dropout = eval) ----
    out_ref[...] = (jnp.dot(flat, head_w_ref[...], preferred_element_type=f32)
                    + head_b_ref[...]).astype(out_ref.dtype)


# ----------------------------------------------------------------------------
# Deterministic parameter init (shapes follow RespLLM.__init__, fused weights)
# ----------------------------------------------------------------------------
def init_params(key, spec_freq):
    ks = jax.random.split(key, 12)
    std = 0.05
    f32 = jnp.float32

    def w(k, shape):
        return (std * jax.random.normal(k, shape)).astype(f32)

    D, M, E, H = CFG.llm_dim, CFG.mlp_dim, CFG.enc_dim, CFG.enc_hidden

    head_w = w(ks[9], (CFG.head_nf, CFG.n_cls))
    head_w_pad = jnp.zeros((CFG.head_nf, CFG.n_cls_pad), f32).at[:, :CFG.n_cls].set(head_w)

    return {
        # stand-in operaCT audio encoder (frozen): mean-pool + 2-layer MLP -> d_audio
        "enc_w1": w(ks[0], (spec_freq, H)),
        "enc_b1": jnp.zeros((1, H), f32),
        "enc_w2": w(ks[1], (H, E)),
        "enc_b2": jnp.zeros((1, E), f32),
        # aligner: nn.Linear(d_audio, d_llm)
        "align_w": w(ks[2], (E, D)),
        "align_b": jnp.zeros((1, D), f32),
        # stand-in LLaMA: token embedding + one decoder layer + final norm
        "embed": w(ks[3], (CFG.vocab, D)),
        "wqkv": w(ks[4], (D, 3 * D)),        # fused q/k/v projection
        "wo": w(ks[5], (D, D)),
        "w_gu": w(ks[6], (D, 2 * M)),        # fused gate/up projection
        "w_down": w(ks[7], (M, D)),
        "rms1": jnp.ones((1, D), f32),
        "rms2": jnp.ones((1, D), f32),
        "rmsf": jnp.ones((1, D), f32),
        # FlattenHead: nn.Linear(head_nf = d_ff * patch_nums, n_cls), lane-padded to 128
        "head_w_pad": head_w_pad,
        "head_b_pad": jnp.zeros((1, CFG.n_cls_pad), f32),
    }


# ----------------------------------------------------------------------------
# RespLLM.forward (patch_nums == 1, use_audio == True, eval / no dropout)
# ----------------------------------------------------------------------------
def respllm_forward(params, x_spectrogram, prompt_ids, context_ids, no_fc=False):
    B = x_spectrogram.shape[0]
    D = CFG.llm_dim

    # TODO(synk): HF LlamaTokenizer string->ids has no Pallas equivalent; ids passed in directly.
    prompt_emb = jnp.take(params["embed"], prompt_ids, axis=0)                  # (B, Lp, D)
    context_emb = jnp.take(params["embed"], context_ids, axis=0)                # (B, Lc, D)
    tok_emb = jnp.concatenate([prompt_emb, context_emb], axis=1)                # (B, L, D)
    L = tok_emb.shape[1]
    S = L + 1                                                                   # + audio token
    scale = 1.0 / math.sqrt(D)

    out_pad, flat = pl.pallas_call(
        functools.partial(_respllm_fused_kernel, scale=scale, d_llm=D,
                          mlp_dim=CFG.mlp_dim, d_ff=CFG.d_ff),
        out_shape=(jax.ShapeDtypeStruct((B, CFG.n_cls_pad), jnp.float32),
                   jax.ShapeDtypeStruct((B, CFG.head_nf), jnp.float32)),
        scratch_shapes=[pltpu.VMEM((B, S, D), jnp.float32)],
    )(x_spectrogram.astype(jnp.float32), tok_emb,
      params["enc_w1"], params["enc_b1"], params["enc_w2"], params["enc_b2"],
      params["align_w"], params["align_b"],
      params["wqkv"], params["wo"], params["w_gu"], params["w_down"],
      params["rms1"], params["rms2"], params["rmsf"],
      params["head_w_pad"], params["head_b_pad"])

    if no_fc:
        return flat                                                             # (B, head_nf)
    return out_pad[:, :CFG.n_cls]                                               # (B, n_cls)


# ----------------------------------------------------------------------------
if __name__ == "__main__":
    key = jax.random.PRNGKey(0)
    k_spec, k_prompt, k_ctx, k_params = jax.random.split(key, 4)

    B, T, F = 2, 16, 64         # spectrogram: batch, time frames, mel bins
    Lp, Lc = 5, 2               # prompt / context token lengths -> S = 8 (sublane aligned)

    x_spectrogram = jax.random.normal(k_spec, (B, T, F), dtype=jnp.float32)
    prompt_ids = jax.random.randint(k_prompt, (B, Lp), 0, CFG.vocab, dtype=jnp.int32)
    context_ids = jax.random.randint(k_ctx, (B, Lc), 0, CFG.vocab, dtype=jnp.int32)

    params = init_params(k_params, F)

    fwd = jax.jit(respllm_forward, static_argnames=("no_fc",))
    out = fwd(params, x_spectrogram, prompt_ids, context_ids, no_fc=False)
    out = jax.block_until_ready(out)

    assert out.shape == (B, CFG.n_cls), out.shape
    assert bool(jnp.all(jnp.isfinite(out)))
    print("KERNEL_OK")
</pallas_src>

<mosaic_0001>
module attributes {stable_mosaic.version = 11 : i64} {
  func.func @_respllm_fused_kernel(%arg0: memref<2x16x64xf32, #tpu.memory_space<vmem>>, %arg1: memref<2x7x128xf32, #tpu.memory_space<vmem>>, %arg2: memref<64x128xf32, #tpu.memory_space<vmem>>, %arg3: memref<1x128xf32, #tpu.memory_space<vmem>>, %arg4: memref<128x128xf32, #tpu.memory_space<vmem>>, %arg5: memref<1x128xf32, #tpu.memory_space<vmem>>, %arg6: memref<128x128xf32, #tpu.memory_space<vmem>>, %arg7: memref<1x128xf32, #tpu.memory_space<vmem>>, %arg8: memref<128x384xf32, #tpu.memory_space<vmem>>, %arg9: memref<128x128xf32, #tpu.memory_space<vmem>>, %arg10: memref<128x512xf32, #tpu.memory_space<vmem>>, %arg11: memref<256x128xf32, #tpu.memory_space<vmem>>, %arg12: memref<1x128xf32, #tpu.memory_space<vmem>>, %arg13: memref<1x128xf32, #tpu.memory_space<vmem>>, %arg14: memref<1x128xf32, #tpu.memory_space<vmem>>, %arg15: memref<16x128xf32, #tpu.memory_space<vmem>>, %arg16: memref<1x128xf32, #tpu.memory_space<vmem>>, %arg17: memref<2x128xf32, #tpu.memory_space<vmem>>, %arg18: memref<2x16xf32, #tpu.memory_space<vmem>>, %arg19: memref<2x8x128xf32, #tpu.memory_space<vmem>>) attributes {dimension_semantics = [], scalar_prefetch = 0 : i64, scratch_operands = 1 : i64, tpu.core_type = #tpu.core_type<tc>} {
    %c0 = arith.constant 0 : index
    %c0_0 = arith.constant 0 : index
    %c0_1 = arith.constant 0 : index
    %0 = vector.load %arg0[%c0, %c0_0, %c0_1] : memref<2x16x64xf32, #tpu.memory_space<vmem>>, vector<2x16x64xf32>
    %cst = arith.constant dense<0.000000e+00> : vector<2x64xf32>
    %1 = vector.multi_reduction <add>, %0, %cst [1] : vector<2x16x64xf32> to vector<2x64xf32>
    %cst_2 = arith.constant 1.600000e+01 : f32
    %2 = vector.broadcast %cst_2 : f32 to vector<2x64xf32>
    %3 = arith.divf %1, %2 : vector<2x64xf32>
    %c0_3 = arith.constant 0 : index
    %c0_4 = arith.constant 0 : index
    %4 = vector.load %arg2[%c0_3, %c0_4] : memref<64x128xf32, #tpu.memory_space<vmem>>, vector<64x128xf32>
    %cst_5 = arith.constant dense<0.000000e+00> : vector<2x128xf32>
    %5 = tpu.matmul %3, %4, %cst_5 {dimension_numbers = #tpu.dot_dimension_numbers<[1], [0], [0], [1], [0, 0, 1, 1], [], []>} : vector<2x64xf32>, vector<64x128xf32>, vector<2x128xf32> -> vector<2x128xf32>
    %c0_6 = arith.constant 0 : index
    %c0_7 = arith.constant 0 : index
    %6 = vector.load %arg3[%c0_6, %c0_7] : memref<1x128xf32, #tpu.memory_space<vmem>>, vector<1x128xf32>
    %7 = vector.broadcast %6 : vector<1x128xf32> to vector<2x128xf32>
    %8 = arith.addf %5, %7 : vector<2x128xf32>
    %9 = arith.mulf %8, %8 : vector<2x128xf32>
    %10 = arith.mulf %8, %9 : vector<2x128xf32>
    %cst_8 = arith.constant 4.471500e-02 : f32
    %11 = vector.broadcast %cst_8 : f32 to vector<2x128xf32>
    %12 = arith.mulf %11, %10 : vector<2x128xf32>
    %13 = arith.addf %8, %12 : vector<2x128xf32>
    %cst_9 = arith.constant 0.797884583 : f32
    %14 = vector.broadcast %cst_9 : f32 to vector<2x128xf32>
    %15 = arith.mulf %14, %13 : vector<2x128xf32>
    %16 = math.tanh %15 : vector<2x128xf32>
    %cst_10 = arith.constant 1.000000e+00 : f32
    %17 = vector.broadcast %cst_10 : f32 to vector<2x128xf32>
    %18 = arith.addf %17, %16 : vector<2x128xf32>
    %cst_11 = arith.constant 5.000000e-01 : f32
    %19 = vector.broadcast %cst_11 : f32 to vector<2x128xf32>
    %20 = arith.mulf %19, %18 : vector<2x128xf32>
    %21 = arith.mulf %8, %20 : vector<2x128xf32>
    %c0_12 = arith.constant 0 : index
    %c0_13 = arith.constant 0 : index
    %22 = vector.load %arg4[%c0_12, %c0_13] : memref<128x128xf32, #tpu.memory_space<vmem>>, vector<128x128xf32>
    %cst_14 = arith.constant dense<0.000000e+00> : vector<2x128xf32>
    %23 = tpu.matmul %21, %22, %cst_14 {dimension_numbers = #tpu.dot_dimension_numbers<[1], [0], [0], [1], [0, 0, 1, 1], [], []>} : vector<2x128xf32>, vector<128x128xf32>, vector<2x128xf32> -> vector<2x128xf32>
    %c0_15 = arith.constant 0 : index
    %c0_16 = arith.constant 0 : index
    %24 = vector.load %arg5[%c0_15, %c0_16] : memref<1x128xf32, #tpu.memory_space<vmem>>, vector<1x128xf32>
    %25 = vector.broadcast %24 : vector<1x128xf32> to vector<2x128xf32>
    %26 = arith.addf %23, %25 : vector<2x128xf32>
    %c0_17 = arith.constant 0 : index
    %c0_18 = arith.constant 0 : index
    %27 = vector.load %arg6[%c0_17, %c0_18] : memref<128x128xf32, #tpu.memory_space<vmem>>, vector<128x128xf32>
    %cst_19 = arith.constant dense<0.000000e+00> : vector<2x128xf32>
    %28 = tpu.matmul %26, %27, %cst_19 {dimension_numbers = #tpu.dot_dimension_numbers<[1], [0], [0], [1], [0, 0, 1, 1], [], []>} : vector<2x128xf32>, vector<128x128xf32>, vector<2x128xf32> -> vector<2x128xf32>
    %c0_20 = arith.constant 0 : index
    %c0_21 = arith.constant 0 : index
    %29 = vector.load %arg7[%c0_20, %c0_21] : memref<1x128xf32, #tpu.memory_space<vmem>>, vector<1x128xf32>
    %30 = vector.broadcast %29 : vector<1x128xf32> to vector<2x128xf32>
    %31 = arith.addf %28, %30 : vector<2x128xf32>
    %c0_22 = arith.constant 0 : index
    %c0_23 = arith.constant 0 : index
    %c0_24 = arith.constant 0 : index
    %32 = vector.load %arg1[%c0_22, %c0_23, %c0_24] : memref<2x7x128xf32, #tpu.memory_space<vmem>>, vector<2x7x128xf32>
    %c0_25 = arith.constant 0 : index
    %c0_26 = arith.constant 0 : index
    %c0_27 = arith.constant 0 : index
    %33 = vector.load %arg19[%c0_25, %c0_26, %c0_27] : memref<2x8x128xf32, #tpu.memory_space<vmem>>, vector<2x7x128xf32>
    tpu.vector_store %arg19[%c0_25, %c0_26, %c0_27], %32 {strides = array<i32>} : memref<2x8x128xf32, #tpu.memory_space<vmem>>, vector<2x7x128xf32>,
    %34 = vector.shape_cast %31 : vector<2x128xf32> to vector<2x1x128xf32>
    %c0_28 = arith.constant 0 : index
    %c7 = arith.constant 7 : index
    %c0_29 = arith.constant 0 : index
    %35 = vector.load %arg19[%c0_28, %c7, %c0_29] : memref<2x8x128xf32, #tpu.memory_space<vmem>>, vector<2x1x128xf32>
    tpu.vector_store %arg19[%c0_28, %c7, %c0_29], %34 {strides = array<i32>} : memref<2x8x128xf32, #tpu.memory_space<vmem>>, vector<2x1x128xf32>,
    %c0_30 = arith.constant 0 : index
    %c0_31 = arith.constant 0 : index
    %c0_32 = arith.constant 0 : index
    %36 = vector.load %arg19[%c0_30, %c0_31, %c0_32] : memref<2x8x128xf32, #tpu.memory_space<vmem>>, vector<2x8x128xf32>
    %37 = vector.shape_cast %36 : vector<2x8x128xf32> to vector<16x128xf32>
    %38 = arith.mulf %37, %37 : vector<16x128xf32>
    %cst_33 = arith.constant dense<0.000000e+00> : vector<16xf32>
    %39 = vector.multi_reduction <add>, %38, %cst_33 [1] : vector<16x128xf32> to vector<16xf32>
    %40 = vector.shape_cast %39 : vector<16xf32> to vector<16x1xf32>
    %cst_34 = arith.constant 1.280000e+02 : f32
    %41 = vector.broadcast %cst_34 : f32 to vector<16x1xf32>
    %42 = arith.divf %40, %41 : vector<16x1xf32>
    %cst_35 = arith.constant 9.99999997E-7 : f32
    %43 = vector.broadcast %cst_35 : f32 to vector<16x1xf32>
    %44 = arith.addf %42, %43 : vector<16x1xf32>
    %45 = math.rsqrt %44 : vector<16x1xf32>
    %46 = vector.broadcast %45 : vector<16x1xf32> to vector<16x128xf32>
    %47 = arith.mulf %37, %46 : vector<16x128xf32>
    %c0_36 = arith.constant 0 : index
    %c0_37 = arith.constant 0 : index
    %48 = vector.load %arg12[%c0_36, %c0_37] : memref<1x128xf32, #tpu.memory_space<vmem>>, vector<1x128xf32>
    %49 = vector.broadcast %48 : vector<1x128xf32> to vector<16x128xf32>
    %50 = arith.mulf %47, %49 : vector<16x128xf32>
    %c0_38 = arith.constant 0 : index
    %c0_39 = arith.constant 0 : index
    %51 = vector.load %arg8[%c0_38, %c0_39] : memref<128x384xf32, #tpu.memory_space<vmem>>, vector<128x384xf32>
    %cst_40 = arith.constant dense<0.000000e+00> : vector<16x384xf32>
    %52 = tpu.matmul %50, %51, %cst_40 {dimension_numbers = #tpu.dot_dimension_numbers<[1], [0], [0], [1], [0, 0, 1, 1], [], []>} : vector<16x128xf32>, vector<128x384xf32>, vector<16x384xf32> -> vector<16x384xf32>
    %53 = vector.shape_cast %52 : vector<16x384xf32> to vector<2x8x384xf32>
    %54 = vector.extract_strided_slice %53 {offsets = [0, 0, 0], sizes = [2, 8, 128], strides = [1, 1, 1]} : vector<2x8x384xf32> to vector<2x8x128xf32>
    %55 = vector.extract_strided_slice %53 {offsets = [0, 0, 128], sizes = [2, 8, 128], strides = [1, 1, 1]} : vector<2x8x384xf32> to vector<2x8x128xf32>
    %56 = vector.extract_strided_slice %53 {offsets = [0, 0, 256], sizes = [2, 8, 128], strides = [1, 1, 1]} : vector<2x8x384xf32> to vector<2x8x128xf32>
    "tpu.trace_start"() <{level = 10 : i32, message = "bqd,bkd->bqk"}> : () -> ()
    %cst_41 = arith.constant dense<0.000000e+00> : vector<2x8x8xf32>
    %57 = tpu.matmul %54, %55, %cst_41 {dimension_numbers = #tpu.dot_dimension_numbers<[2], [2], [1], [1], [0, 0, 0, 1, 1, 1], [0], [0]>} : vector<2x8x128xf32>, vector<2x8x128xf32>, vector<2x8x8xf32> -> vector<2x8x8xf32>
    "tpu.trace_stop"() : () -> ()
    %cst_42 = arith.constant 0.0883883461 : f32
    %58 = vector.broadcast %cst_42 : f32 to vector<2x8x8xf32>
    %59 = arith.mulf %57, %58 : vector<2x8x8xf32>
    %60 = tpu.iota {dimensions = array<i32: 1>} : vector<2x8x8xi32>
    %61 = tpu.iota {dimensions = array<i32: 2>} : vector<2x8x8xi32>
    %62 = arith.cmpi sle, %61, %60 : vector<2x8x8xi32>
    %cst_43 = arith.constant -1.000000e+30 : f32
    %63 = vector.broadcast %cst_43 : f32 to vector<2x8x8xf32>
    %64 = arith.select %62, %59, %63 : vector<2x8x8xi1>, vector<2x8x8xf32>
    %cst_44 = arith.constant dense<0xFF800000> : vector<2x8xf32>
    %65 = vector.multi_reduction <maximumf>, %64, %cst_44 [2] : vector<2x8x8xf32> to vector<2x8xf32>
    %66 = vector.shape_cast %65 : vector<2x8xf32> to vector<2x8x1xf32>
    %67 = vector.broadcast %66 : vector<2x8x1xf32> to vector<2x8x8xf32>
    %68 = arith.subf %64, %67 : vector<2x8x8xf32>
    %69 = math.exp %68 : vector<2x8x8xf32>
    %cst_45 = arith.constant dense<0.000000e+00> : vector<2x8xf32>
    %70 = vector.multi_reduction <add>, %69, %cst_45 [2] : vector<2x8x8xf32> to vector<2x8xf32>
    %71 = vector.shape_cast %70 : vector<2x8xf32> to vector<2x8x1xf32>
    %72 = tpu.reciprocal %71 {approx = true} : vector<2x8x1xf32> -> vector<2x8x1xf32>
    %73 = vector.broadcast %72 : vector<2x8x1xf32> to vector<2x8x8xf32>
    %74 = arith.mulf %69, %73 : vector<2x8x8xf32>
    "tpu.trace_start"() <{level = 10 : i32, message = "bqk,bkd->bqd"}> : () -> ()
    %cst_46 = arith.constant dense<0.000000e+00> : vector<2x8x128xf32>
    %75 = tpu.matmul %74, %56, %cst_46 {dimension_numbers = #tpu.dot_dimension_numbers<[2], [1], [1], [2], [0, 0, 0, 1, 1, 2], [0], [0]>} : vector<2x8x8xf32>, vector<2x8x128xf32>, vector<2x8x128xf32> -> vector<2x8x128xf32>
    "tpu.trace_stop"() : () -> ()
    %76 = vector.shape_cast %75 : vector<2x8x128xf32> to vector<16x128xf32>
    %c0_47 = arith.constant 0 : index
    %c0_48 = arith.constant 0 : index
    %77 = vector.load %arg9[%c0_47, %c0_48] : memref<128x128xf32, #tpu.memory_space<vmem>>, vector<128x128xf32>
    %cst_49 = arith.constant dense<0.000000e+00> : vector<16x128xf32>
    %78 = tpu.matmul %76, %77, %cst_49 {dimension_numbers = #tpu.dot_dimension_numbers<[1], [0], [0], [1], [0, 0, 1, 1], [], []>} : vector<16x128xf32>, vector<128x128xf32>, vector<16x128xf32> -> vector<16x128xf32>
    %79 = arith.addf %37, %78 : vector<16x128xf32>
    %80 = arith.mulf %79, %79 : vector<16x128xf32>
    %cst_50 = arith.constant dense<0.000000e+00> : vector<16xf32>
    %81 = vector.multi_reduction <add>, %80, %cst_50 [1] : vector<16x128xf32> to vector<16xf32>
    %82 = vector.shape_cast %81 : vector<16xf32> to vector<16x1xf32>
    %cst_51 = arith.constant 1.280000e+02 : f32
    %83 = vector.broadcast %cst_51 : f32 to vector<16x1xf32>
    %84 = arith.divf %82, %83 : vector<16x1xf32>
    %cst_52 = arith.constant 9.99999997E-7 : f32
    %85 = vector.broadcast %cst_52 : f32 to vector<16x1xf32>
    %86 = arith.addf %84, %85 : vector<16x1xf32>
    %87 = math.rsqrt %86 : vector<16x1xf32>
    %88 = vector.broadcast %87 : vector<16x1xf32> to vector<16x128xf32>
    %89 = arith.mulf %79, %88 : vector<16x128xf32>
    %c0_53 = arith.constant 0 : index
    %c0_54 = arith.constant 0 : index
    %90 = vector.load %arg13[%c0_53, %c0_54] : memref<1x128xf32, #tpu.memory_space<vmem>>, vector<1x128xf32>
    %91 = vector.broadcast %90 : vector<1x128xf32> to vector<16x128xf32>
    %92 = arith.mulf %89, %91 : vector<16x128xf32>
    %c0_55 = arith.constant 0 : index
    %c0_56 = arith.constant 0 : index
    %93 = vector.load %arg10[%c0_55, %c0_56] : memref<128x512xf32, #tpu.memory_space<vmem>>, vector<128x512xf32>
    %cst_57 = arith.constant dense<0.000000e+00> : vector<16x512xf32>
    %94 = tpu.matmul %92, %93, %cst_57 {dimension_numbers = #tpu.dot_dimension_numbers<[1], [0], [0], [1], [0, 0, 1, 1], [], []>} : vector<16x128xf32>, vector<128x512xf32>, vector<16x512xf32> -> vector<16x512xf32>
    %95 = vector.extract_strided_slice %94 {offsets = [0, 0], sizes = [16, 256], strides = [1, 1]} : vector<16x512xf32> to vector<16x256xf32>
    %96 = arith.negf %95 : vector<16x256xf32>
    %97 = math.exp %96 : vector<16x256xf32>
    %cst_58 = arith.constant 1.000000e+00 : f32
    %98 = vector.broadcast %cst_58 : f32 to vector<16x256xf32>
    %99 = arith.addf %98, %97 : vector<16x256xf32>
    %100 = arith.divf %98, %99 : vector<16x256xf32>
    %101 = arith.mulf %95, %100 : vector<16x256xf32>
    %102 = vector.extract_strided_slice %94 {offsets = [0, 256], sizes = [16, 256], strides = [1, 1]} : vector<16x512xf32> to vector<16x256xf32>
    %103 = arith.mulf %101, %102 : vector<16x256xf32>
    %c0_59 = arith.constant 0 : index
    %c0_60 = arith.constant 0 : index
    %104 = vector.load %arg11[%c0_59, %c0_60] : memref<256x128xf32, #tpu.memory_space<vmem>>, vector<256x128xf32>
    %cst_61 = arith.constant dense<0.000000e+00> : vector<16x128xf32>
    %105 = tpu.matmul %103, %104, %cst_61 {dimension_numbers = #tpu.dot_dimension_numbers<[1], [0], [0], [1], [0, 0, 1, 1], [], []>} : vector<16x256xf32>, vector<256x128xf32>, vector<16x128xf32> -> vector<16x128xf32>
    %106 = arith.addf %79, %105 : vector<16x128xf32>
    %107 = arith.mulf %106, %106 : vector<16x128xf32>
    %cst_62 = arith.constant dense<0.000000e+00> : vector<16xf32>
    %108 = vector.multi_reduction <add>, %107, %cst_62 [1] : vector<16x128xf32> to vector<16xf32>
    %109 = vector.shape_cast %108 : vector<16xf32> to vector<16x1xf32>
    %cst_63 = arith.constant 1.280000e+02 : f32
    %110 = vector.broadcast %cst_63 : f32 to vector<16x1xf32>
    %111 = arith.divf %109, %110 : vector<16x1xf32>
    %cst_64 = arith.constant 9.99999997E-7 : f32
    %112 = vector.broadcast %cst_64 : f32 to vector<16x1xf32>
    %113 = arith.addf %111, %112 : vector<16x1xf32>
    %114 = math.rsqrt %113 : vector<16x1xf32>
    %115 = vector.broadcast %114 : vector<16x1xf32> to vector<16x128xf32>
    %116 = arith.mulf %106, %115 : vector<16x128xf32>
    %c0_65 = arith.constant 0 : index
    %c0_66 = arith.constant 0 : index
    %117 = vector.load %arg14[%c0_65, %c0_66] : memref<1x128xf32, #tpu.memory_space<vmem>>, vector<1x128xf32>
    %118 = vector.broadcast %117 : vector<1x128xf32> to vector<16x128xf32>
    %119 = arith.mulf %116, %118 : vector<16x128xf32>
    %120 = vector.shape_cast %119 : vector<16x128xf32> to vector<2x8x128xf32>
    %121 = vector.extract_strided_slice %120 {offsets = [0, 7, 0], sizes = [2, 1, 16], strides = [1, 1, 1]} : vector<2x8x128xf32> to vector<2x1x16xf32>
    %122 = vector.shape_cast %121 : vector<2x1x16xf32> to vector<2x16xf32>
    %c0_67 = arith.constant 0 : index
    %c0_68 = arith.constant 0 : index
    %123 = vector.load %arg18[%c0_67, %c0_68] : memref<2x16xf32, #tpu.memory_space<vmem>>, vector<2x16xf32>
    tpu.vector_store %arg18[%c0_67, %c0_68], %122 {strides = array<i32>} : memref<2x16xf32, #tpu.memory_space<vmem>>, vector<2x16xf32>,
    %c0_69 = arith.constant 0 : index
    %c0_70 = arith.constant 0 : index
    %124 = vector.load %arg15[%c0_69, %c0_70] : memref<16x128xf32, #tpu.memory_space<vmem>>, vector<16x128xf32>
    %cst_71 = arith.constant dense<0.000000e+00> : vector<2x128xf32>
    %125 = tpu.matmul %122, %124, %cst_71 {dimension_numbers = #tpu.dot_dimension_numbers<[1], [0], [0], [1], [0, 0, 1, 1], [], []>} : vector<2x16xf32>, vector<16x128xf32>, vector<2x128xf32> -> vector<2x128xf32>
    %c0_72 = arith.constant 0 : index
    %c0_73 = arith.constant 0 : index
    %126 = vector.load %arg16[%c0_72, %c0_73] : memref<1x128xf32, #tpu.memory_space<vmem>>, vector<1x128xf32>
    %127 = vector.broadcast %126 : vector<1x128xf32> to vector<2x128xf32>
    %128 = arith.addf %125, %127 : vector<2x128xf32>
    %c0_74 = arith.constant 0 : index
    %c0_75 = arith.constant 0 : index
    %129 = vector.load %arg17[%c0_74, %c0_75] : memref<2x128xf32, #tpu.memory_space<vmem>>, vector<2x128xf32>
    tpu.vector_store %arg17[%c0_74, %c0_75], %128 {strides = array<i32>} : memref<2x128xf32, #tpu.memory_space<vmem>>, vector<2x128xf32>,
    return
  }
}

</mosaic_0001>

<llo_original>
// kernel: respllm_forward.1
$region0: #{respllm_forward.1}
  #allocation0 [shape = 'u32[]', space=smem, size = 0x4, offset = 0x4, fixed_abs, tag = 'smem constant byte address 0x4 - core index']
  #allocation1 [shape = 'u32[144,128]{1,0:T(1,128)}', space=vmem, size = 0x12000, scoped, tag = 'internal scratch']
  #allocation2 [shape = 'f32[2,8,128]{2,1,0:T(8,128)}', space=vmem, size = 0x2000, scoped, tag = 'scratch operand']
  %s0 = inlined_call_operand.hbm [shape: f32[2,16,64], index: 0, kind: input, shape index: {}]
  %s1 = inlined_call_operand.vmem [shape: f32[2,7,128], index: 1, kind: input, shape index: {}]
  %s2 = inlined_call_operand.hbm [shape: f32[64,128], index: 2, kind: input, shape index: {}]
  %s3 = inlined_call_operand.vmem [shape: f32[1,128], index: 3, kind: input, shape index: {}]
  %s4 = inlined_call_operand.hbm [shape: f32[128,128], index: 4, kind: input, shape index: {}]
  %s5 = inlined_call_operand.vmem [shape: f32[1,128], index: 5, kind: input, shape index: {}]
  %s6 = inlined_call_operand.vmem [shape: f32[128,128], index: 6, kind: input, shape index: {}]
  %s7 = inlined_call_operand.vmem [shape: f32[1,128], index: 7, kind: input, shape index: {}]
  %s8 = inlined_call_operand.hbm [shape: f32[128,384], index: 8, kind: input, shape index: {}]
  %s9 = inlined_call_operand.hbm [shape: f32[128,128], index: 9, kind: input, shape index: {}]
  %s10 = inlined_call_operand.hbm [shape: f32[128,512], index: 10, kind: input, shape index: {}]
  %s11 = inlined_call_operand.vmem [shape: f32[256,128], index: 11, kind: input, shape index: {}]
  %s12 = inlined_call_operand.hbm [shape: f32[1,128], index: 12, kind: input, shape index: {}]
  %s13 = inlined_call_operand.hbm [shape: f32[1,128], index: 13, kind: input, shape index: {}]
  %s14 = inlined_call_operand.hbm [shape: f32[1,128], index: 14, kind: input, shape index: {}]
  %s15 = inlined_call_operand.hbm [shape: f32[16,128], index: 15, kind: input, shape index: {}]
  %s16 = inlined_call_operand.hbm [shape: f32[1,128], index: 16, kind: input, shape index: {}]
  %s17 = inlined_call_operand.hbm [shape: f32[2,128], index: 17, kind: output, shape index: {0}]
  %s18 = inlined_call_operand.hbm [shape: f32[2,16], index: 18, kind: output, shape index: {1}]
  %19 = xla_tuple %s17, %s18
  %s20 = sld [smem:[#allocation0]]
  $region130: #{respllm_forward.1} parent=0
    _
  %s22 = ssub.s32 1, %s20
  %s23 = scalar_select 0, %s22, %s20
  $region1: #{respllm_forward.1} parent=0
    #allocation3 [shape = 'u8[16384]{0}', space=vmem, size = 0x4000, scoped, tag = 'input window, operand 0, single buffered']
    #allocation4 [shape = 's32[1]{0}', space=sflag, size = 0x4, scoped, tag = 'scoped memory for respllm_forward.1']
    #allocation5 [shape = 's32[1]{0}', space=sflag, size = 0x4, scoped, tag = 'scoped memory for respllm_forward.1']
    #allocation6 [shape = 'u8[32768]{0}', space=vmem, size = 0x8000, scoped, tag = 'input window, operand 2, single buffered']
    #allocation7 [shape = 's32[1]{0}', space=sflag, size = 0x4, scoped, tag = 'scoped memory for respllm_forward.1']
    #allocation8 [shape = 'u8[65536]{0}', space=vmem, size = 0x10000, scoped, tag = 'input window, operand 4, single buffered']
    #allocation9 [shape = 'u8[196608]{0}', space=vmem, size = 0x30000, scoped, tag = 'input window, operand 8, single buffered']
    #allocation10 [shape = 's32[1]{0}', space=sflag, size = 0x4, scoped, tag = 'scoped memory for respllm_forward.1']
    #allocation11 [shape = 'u8[65536]{0}', space=vmem, size = 0x10000, scoped, tag = 'input window, operand 9, single buffered']
    #allocation12 [shape = 'u8[262144]{0}', space=vmem, size = 0x40000, scoped, tag = 'input window, operand 10, single buffered']
    #allocation13 [shape = 's32[1]{0}', space=sflag, size = 0x4, scoped, tag = 'scoped memory for respllm_forward.1']
    #allocation14 [shape = 'u8[512]{0}', space=vmem, size = 0x400, scoped, tag = 'input window, operand 12, single buffered']
    #allocation15 [shape = 'u8[512]{0}', space=vmem, size = 0x400, scoped, tag = 'input window, operand 13, single buffered']
    #allocation16 [shape = 's32[1]{0}', space=sflag, size = 0x4, scoped, tag = 'scoped memory for respllm_forward.1']
    #allocation17 [shape = 'u8[512]{0}', space=vmem, size = 0x400, scoped, tag = 'input window, operand 14, single buffered']
    #allocation18 [shape = 'u8[8192]{0}', space=vmem, size = 0x2000, scoped, tag = 'input window, operand 15, single buffered']
    #allocation19 [shape = 's32[1]{0}', space=sflag, size = 0x4, scoped, tag = 'scoped memory for respllm_forward.1']
    #allocation20 [shape = 'u8[512]{0}', space=vmem, size = 0x400, scoped, tag = 'input window, operand 16, single buffered']
    #allocation21 [shape = 'u8[1024]{0}', space=vmem, size = 0x400, scoped, tag = 'output window, operand 0, single buffered']
    #allocation22 [shape = 'u8[1024]{0}', space=vmem, size = 0x400, scoped, tag = 'output window, operand 1, single buffered']
    #allocation23 [shape = 's32[1]{0}', space=sflag, size = 0x4, scoped, tag = 'scoped memory for respllm_forward.1']
    %24 = vsyncpa [#allocation4], 0
    %25 = vsyncpa [#allocation7], 0
    %26 = vsyncpa [#allocation10], 0
    %27 = vsyncpa [#allocation13], 0
    %28 = vsyncpa [#allocation16], 0
    %29 = vsyncpa [#allocation19], 0
    %30 = vsyncpa [#allocation5], 0
    %31 = vsyncpa [#allocation23], 0
    // Predicated region
    $region2: #{respllm_forward.1} parent=1 // pred_check
      _
    $region3: #{respllm_forward.1} parent=1 // pred_check_branch
      %33 = sbr.rel (0) target = $region5
    $region4: #{respllm_forward.1} parent=1 // pred_region
      %s35 = ssub.s32 512, 512
      %36 = vsyncadd [#allocation4], %s35
      %s37 = sshll.u32 [#allocation3], 4
      %s38 = int_to_ptr.vmem [resolvable:$true] %s37
      %43 = dma.hbm_to_vmem [thread:$0]  %s0, 512, %s38, [#allocation4], 128, 128, 8
    $region5: #{respllm_forward.1} parent=1 // pred_fallthru
      _
    // Predicated region
    $region6: #{respllm_forward.1} parent=1 // pred_check
      _
    $region7: #{respllm_forward.1} parent=1 // pred_check_branch
      %45 = sbr.rel (0) target = $region9
    $region8: #{respllm_forward.1} parent=1 // pred_region
      _
    $region9: #{respllm_forward.1} parent=1 // pred_fallthru
      _
    // Predicated region
    $region10: #{respllm_forward.1} parent=1 // pred_check
      _
    $region11: #{respllm_forward.1} parent=1 // pred_check_branch
      %47 = sbr.rel (0) target = $region13
    $region12: #{respllm_forward.1} parent=1 // pred_region
      %s49 = ssub.s32 1024, 1024
      %50 = vsyncadd [#allocation7], %s49
      %s51 = sshll.u32 [#allocation6], 4
      %s52 = int_to_ptr.vmem [resolvable:$true] %s51
      %57 = dma.hbm_to_vmem [thread:$0]  %s2, 1024, %s52, [#allocation7], 128, 128, 8
    $region13: #{respllm_forward.1} parent=1 // pred_fallthru
      _
    // Predicated region
    $region14: #{respllm_forward.1} parent=1 // pred_check
      _
    $region15: #{respllm_forward.1} parent=1 // pred_check_branch
      %59 = sbr.rel (0) target = $region17
    $region16: #{respllm_forward.1} parent=1 // pred_region
      _
    $region17: #{respllm_forward.1} parent=1 // pred_fallthru
      _
    // Predicated region
    $region18: #{respllm_forward.1} parent=1 // pred_check
      _
    $region19: #{respllm_forward.1} parent=1 // pred_check_branch
      %61 = sbr.rel (0) target = $region21
    $region20: #{respllm_forward.1} parent=1 // pred_region
      %s63 = ssub.s32 2048, 2048
      %64 = vsyncadd [#allocation7], %s63
      %s65 = sshll.u32 [#allocation8], 4
      %s66 = int_to_ptr.vmem [resolvable:$true] %s65
      %71 = dma.hbm_to_vmem [thread:$0]  %s4, 2048, %s66, [#allocation7], 128, 128, 8
    $region21: #{respllm_forward.1} parent=1 // pred_fallthru
      _
    // Predicated region
    $region22: #{respllm_forward.1} parent=1 // pred_check
      _
    $region23: #{respllm_forward.1} parent=1 // pred_check_branch
      %73 = sbr.rel (0) target = $region25
    $region24: #{respllm_forward.1} parent=1 // pred_region
      _
    $region25: #{respllm_forward.1} parent=1 // pred_fallthru
      _
    // Predicated region
    $region26: #{respllm_forward.1} parent=1 // pred_check
      _
    $region27: #{respllm_forward.1} parent=1 // pred_check_branch
      %75 = sbr.rel (0) target = $region29
    $region28: #{respllm_forward.1} parent=1 // pred_region
      _
    $region29: #{respllm_forward.1} parent=1 // pred_fallthru
      _
    // Predicated region
    $region30: #{respllm_forward.1} parent=1 // pred_check
      _
    $region31: #{respllm_forward.1} parent=1 // pred_check_branch
      %77 = sbr.rel (0) target = $region33
    $region32: #{respllm_forward.1} parent=1 // pred_region
      _
    $region33: #{respllm_forward.1} parent=1 // pred_fallthru
      _
    // Predicated region
    $region34: #{respllm_forward.1} parent=1 // pred_check
      _
    $region35: #{respllm_forward.1} parent=1 // pred_check_branch
      %79 = sbr.rel (0) target = $region37
    $region36: #{respllm_forward.1} parent=1 // pred_region
      %s81 = ssub.s32 6144, 6144
      %82 = vsyncadd [#allocation10], %s81
      %s83 = sshll.u32 [#allocation9], 4
      %s84 = int_to_ptr.vmem [resolvable:$true] %s83
      %89 = dma.hbm_to_vmem [thread:$0]  %s8, 6144, %s84, [#allocation10], 384, 384, 24
    $region37: #{respllm_forward.1} parent=1 // pred_fallthru
      _
    // Predicated region
    $region38: #{respllm_forward.1} parent=1 // pred_check
      _
    $region39: #{respllm_forward.1} parent=1 // pred_check_branch
      %91 = sbr.rel (0) target = $region41
    $region40: #{respllm_forward.1} parent=1 // pred_region
      %s93 = ssub.s32 2048, 2048
      %94 = vsyncadd [#allocation10], %s93
      %s95 = sshll.u32 [#allocation11], 4
      %s96 = int_to_ptr.vmem [resolvable:$true] %s95
      %101 = dma.hbm_to_vmem [thread:$0]  %s9, 2048, %s96, [#allocation10], 128, 128, 8
    $region41: #{respllm_forward.1} parent=1 // pred_fallthru
      _
    // Predicated region
    $region42: #{respllm_forward.1} parent=1 // pred_check
      _
    $region43: #{respllm_forward.1} parent=1 // pred_check_branch
      %103 = sbr.rel (0) target = $region45
    $region44: #{respllm_forward.1} parent=1 // pred_region
      %s105 = ssub.s32 8192, 8192
      %106 = vsyncadd [#allocation13], %s105
      %s107 = sshll.u32 [#allocation12], 4
      %s108 = int_to_ptr.vmem [resolvable:$true] %s107
      %113 = dma.hbm_to_vmem [thread:$0]  %s10, 8192, %s108, [#allocation13], 512, 512, 32
    $region45: #{respllm_forward.1} parent=1 // pred_fallthru
      _
    // Predicated region
    $region46: #{respllm_forward.1} parent=1 // pred_check
      _
    $region47: #{respllm_forward.1} parent=1 // pred_check_branch
      %115 = sbr.rel (0) target = $region49
    $region48: #{respllm_forward.1} parent=1 // pred_region
      _
    $region49: #{respllm_forward.1} parent=1 // pred_fallthru
      _
    // Predicated region
    $region50: #{respllm_forward.1} parent=1 // pred_check
      _
    $region51: #{respllm_forward.1} parent=1 // pred_check_branch
      %117 = sbr.rel (0) target = $region53
    $region52: #{respllm_forward.1} parent=1 // pred_region
      %s119 = ssub.s32 16, 16
      %120 = vsyncadd [#allocation13], %s119
      %s122 = sshll.u32 [#allocation14], 4
      %s123 = int_to_ptr.vmem [resolvable:$true] %s122
      %125 = dma.hbm_to_vmem [thread:$0]  %s12, 16, %s123, [#allocation13]
    $region53: #{respllm_forward.1} parent=1 // pred_fallthru
      _
    // Predicated region
    $region54: #{respllm_forward.1} parent=1 // pred_check
      _
    $region55: #{respllm_forward.1} parent=1 // pred_check_branch
      %127 = sbr.rel (0) target = $region57
    $region56: #{respllm_forward.1} parent=1 // pred_region
      %s129 = ssub.s32 16, 16
      %130 = vsyncadd [#allocation16], %s129
      %s132 = sshll.u32 [#allocation15], 4
      %s133 = int_to_ptr.vmem [resolvable:$true] %s132
      %135 = dma.hbm_to_vmem [thread:$0]  %s13, 16, %s133, [#allocation16]
    $region57: #{respllm_forward.1} parent=1 // pred_fallthru
      _
    // Predicated region
    $region58: #{respllm_forward.1} parent=1 // pred_check
      _
    $region59: #{respllm_forward.1} parent=1 // pred_check_branch
      %137 = sbr.rel (0) target = $region61
    $region60: #{respllm_forward.1} parent=1 // pred_region
      %s139 = ssub.s32 16, 16
      %140 = vsyncadd [#allocation16], %s139
      %s142 = sshll.u32 [#allocation17], 4
      %s143 = int_to_ptr.vmem [resolvable:$true] %s142
      %145 = dma.hbm_to_vmem [thread:$0]  %s14, 16, %s143, [#allocation16]
    $region61: #{respllm_forward.1} parent=1 // pred_fallthru
      _
    // Predicated region
    $region62: #{respllm_forward.1} parent=1 // pred_check
      _
    $region63: #{respllm_forward.1} parent=1 // pred_check_branch
      %147 = sbr.rel (0) target = $region65
    $region64: #{respllm_forward.1} parent=1 // pred_region
      %s149 = ssub.s32 256, 256
      %150 = vsyncadd [#allocation19], %s149
      %s151 = sshll.u32 [#allocation18], 4
      %s152 = int_to_ptr.vmem [resolvable:$true] %s151
      %157 = dma.hbm_to_vmem [thread:$0]  %s15, 256, %s152, [#allocation19], 128, 128, 8
    $region65: #{respllm_forward.1} parent=1 // pred_fallthru
      _
    // Predicated region
    $region66: #{respllm_forward.1} parent=1 // pred_check
      _
    $region67: #{respllm_forward.1} parent=1 // pred_check_branch
      %159 = sbr.rel (0) target = $region69
    $region68: #{respllm_forward.1} parent=1 // pred_region
      %s161 = ssub.s32 16, 16
      %162 = vsyncadd [#allocation19], %s161
      %s164 = sshll.u32 [#allocation20], 4
      %s165 = int_to_ptr.vmem [resolvable:$true] %s164
      %167 = dma.hbm_to_vmem [thread:$0]  %s16, 16, %s165, [#allocation19]
    $region69: #{respllm_forward.1} parent=1 // pred_fallthru
      _
    // Predicated region
    $region70: #{respllm_forward.1} parent=1 // pred_check
      _
    $region71: #{respllm_forward.1} parent=1 // pred_check_branch
      %169 = sbr.rel (0) target = $region73
    $region72: #{respllm_forward.1} parent=1 // pred_region
      %170 = dma.done [#allocation4], 512
    $region73: #{respllm_forward.1} parent=1 // pred_fallthru
      _
    // Predicated region
    $region74: #{respllm_forward.1} parent=1 // pred_check
      _
    $region75: #{respllm_forward.1} parent=1 // pred_check_branch
      %172 = sbr.rel (0) target = $region77
    $region76: #{respllm_forward.1} parent=1 // pred_region
      %173 = dma.done [#allocation7], 1024
    $region77: #{respllm_forward.1} parent=1 // pred_fallthru
      _
    // Predicated region
    $region78: #{respllm_forward.1} parent=1 // pred_check
      _
    $region79: #{respllm_forward.1} parent=1 // pred_check_branch
      %175 = sbr.rel (0) target = $region81
    $region80: #{respllm_forward.1} parent=1 // pred_region
      %176 = dma.done [#allocation7], 2048
    $region81: #{respllm_forward.1} parent=1 // pred_fallthru
      _
    // Predicated region
    $region82: #{respllm_forward.1} parent=1 // pred_check
      _
    $region83: #{respllm_forward.1} parent=1 // pred_check_branch
      %178 = sbr.rel (0) target = $region85
    $region84: #{respllm_forward.1} parent=1 // pred_region
      %179 = dma.done [#allocation10], 6144
    $region85: #{respllm_forward.1} parent=1 // pred_fallthru
      _
    // Predicated region
    $region86: #{respllm_forward.1} parent=1 // pred_check
      _
    $region87: #{respllm_forward.1} parent=1 // pred_check_branch
      %181 = sbr.rel (0) target = $region89
    $region88: #{respllm_forward.1} parent=1 // pred_region
      %182 = dma.done [#allocation10], 2048
    $region89: #{respllm_forward.1} parent=1 // pred_fallthru
      _
    // Predicated region
    $region90: #{respllm_forward.1} parent=1 // pred_check
      _
    $region91: #{respllm_forward.1} parent=1 // pred_check_branch
      %184 = sbr.rel (0) target = $region93
    $region92: #{respllm_forward.1} parent=1 // pred_region
      %185 = dma.done [#allocation13], 8192
    $region93: #{respllm_forward.1} parent=1 // pred_fallthru
      _
    // Predicated region
    $region94: #{respllm_forward.1} parent=1 // pred_check
      _
    $region95: #{respllm_forward.1} parent=1 // pred_check_branch
      %187 = sbr.rel (0) target = $region97
    $region96: #{respllm_forward.1} parent=1 // pred_region
      %188 = dma.done [#allocation13], 16
    $region97: #{respllm_forward.1} parent=1 // pred_fallthru
      _
    // Predicated region
    $region98: #{respllm_forward.1} parent=1 // pred_check
      _
    $region99: #{respllm_forward.1} parent=1 // pred_check_branch
      %190 = sbr.rel (0) target = $region101
    $region100: #{respllm_forward.1} parent=1 // pred_region
      %191 = dma.done [#allocation16], 16
    $region101: #{respllm_forward.1} parent=1 // pred_fallthru
      _
    // Predicated region
    $region102: #{respllm_forward.1} parent=1 // pred_check
      _
    $region103: #{respllm_forward.1} parent=1 // pred_check_branch
      %193 = sbr.rel (0) target = $region105
    $region104: #{respllm_forward.1} parent=1 // pred_region
      %194 = dma.done [#allocation16], 16
    $region105: #{respllm_forward.1} parent=1 // pred_fallthru
      _
    // Predicated region
    $region106: #{respllm_forward.1} parent=1 // pred_check
      _
    $region107: #{respllm_forward.1} parent=1 // pred_check_branch
      %196 = sbr.rel (0) target = $region109
    $region108: #{respllm_forward.1} parent=1 // pred_region
      %197 = dma.done [#allocation19], 256
    $region109: #{respllm_forward.1} parent=1 // pred_fallthru
      _
    // Predicated region
    $region110: #{respllm_forward.1} parent=1 // pred_check
      _
    $region111: #{respllm_forward.1} parent=1 // pred_check_branch
      %199 = sbr.rel (0) target = $region113
    $region112: #{respllm_forward.1} parent=1 // pred_region
      %200 = dma.done [#allocation19], 16
    $region113: #{respllm_forward.1} parent=1 // pred_fallthru
      _
    %v201 = vld [vmem:[#allocation3] sm:$0xff]
    %v202 = vld [vmem:[#allocation3 + $0x8] sm:$0xff]
    %v203 = vld [vmem:[#allocation3 + $0x10] sm:$0xff]
    %v204 = vld [vmem:[#allocation3 + $0x18] sm:$0xff]
    %vm205 = vcmask 523264
    %v206 = vsel %vm205, %v201, 0.0
    %v207 = vsel %vm205, %v202, 0.0
    %v208 = vadd.f32 %v206, %v207
    %v209 = vrot.slane %v208, 4
    %v210 = vadd.f32 %v208, %v209
    %v211 = vrot.slane %v210, 2
    %v212 = vadd.f32 %v210, %v211
    %v213 = vrot.slane %v212, 1
    %v214 = vadd.f32 %v212, %v213
    %v215 = vsel %vm205, %v203, 0.0
    %v216 = vsel %vm205, %v204, 0.0
    %v217 = vadd.f32 %v215, %v216
    %v218 = vrot.slane %v217, 4
    %v219 = vadd.f32 %v217, %v218
    %v220 = vrot.slane %v219, 2
    %v221 = vadd.f32 %v219, %v220
    %v222 = vrot.slane %v221, 1
    %v223 = vadd.f32 %v221, %v222
    %v224 = vrcp.pop 16.0
    %v225 = vmul.f32 %v214, %v224
    %v226 = vmul.f32 %v223, %v224
    %v227 = vld [vmem:[#allocation6] sm:$0xff]
    %v228 = vld [vmem:[#allocation6 + $0x8] sm:$0xff]
    %v229 = vld [vmem:[#allocation6 + $0x10] sm:$0xff]
    %v230 = vld [vmem:[#allocation6 + $0x18] sm:$0xff]
    %v231 = vld [vmem:[#allocation6 + $0x20] sm:$0xff]
    %v232 = vld [vmem:[#allocation6 + $0x28] sm:$0xff]
    %v233 = vld [vmem:[#allocation6 + $0x30] sm:$0xff]
    %v234 = vld [vmem:[#allocation6 + $0x38] sm:$0xff]
    %v235 = vld [vmem:[%s3] sm:$0x1]
    %v237 = vlaneseq
    %v238 = vshrl.u32 %v237, 7
    %v239 = vsub.s32 0, %v238
    %v240 = vrot.slane %v235, %v239
    %vm244 = vcmask 1041409
    %v245 = vsel %vm244, %v226, %v225
    %v246 = vsel %vm205, %v245, 0
    %248 = vmatprep.subr.mxu0 0.0
    %249 = vmatpush1.msra.mxu0 %v227
    %250 = vmatprep.subr.mxu0 0.0
    %251 = vmatpush1.msra.mxu0 %v228
    %252 = vmatprep.subr.mxu0 0.0
    %253 = vmatpush1.msra.mxu0 %v229
    %254 = vmatprep.subr.mxu0 0.0
    %255 = vmatpush1.msra.mxu0 %v230
    %256 = vmatprep.subr.mxu0 0.0
    %257 = vmatpush1.msra.mxu0 %v231
    %258 = vmatprep.subr.mxu0 0.0
    %259 = vmatpush1.msra.mxu0 %v232
    %260 = vmatprep.subr.mxu0 0.0
    %261 = vmatpush1.msra.mxu0 %v233
    %262 = vmatprep.subr.mxu0 0.0
    %263 = vmatpush1.msra.mxu0 %v234
    %264 = vmatprep.subr.mxu0 0.0
    %265 = vmatpush1.msra.mxu0 0.0
    %266 = vmatprep.subr.mxu0 0.0
    %267 = vmatpush1.msra.mxu0 0.0
    %268 = vmatprep.subr.mxu0 0.0
    %269 = vmatpush1.msra.mxu0 0.0
    %270 = vmatprep.subr.mxu0 0.0
    %271 = vmatpush1.msra.mxu0 0.0
    %272 = vmatprep.subr.mxu0 0.0
    %273 = vmatpush1.msra.mxu0 0.0
    %274 = vmatprep.subr.mxu0 0.0
    %275 = vmatpush1.msra.mxu0 0.0
    %276 = vmatprep.subr.mxu0 0.0
    %277 = vmatpush1.msra.mxu0 0.0
    %278 = vmatprep.subr.mxu0 0.0
    %279 = vmatpush1.msra.mxu0 0.0
    %280 = vmatprep.subr.mxu0 0.0
    %281 = vmatpush1.msra.mxu0 0.0
    %282 = vmatprep.subr.mxu0 0.0
    %283 = vmatpush1.msra.mxu0 0.0
    %284 = vmatprep.subr.mxu0 0.0
    %285 = vmatpush1.msra.mxu0 0.0
    %286 = vmatprep.subr.mxu0 0.0
    %287 = vmatpush1.msra.mxu0 0.0
    %288 = vmatprep.subr.mxu0 0.0
    %289 = vmatpush1.msra.mxu0 0.0
    %290 = vmatprep.subr.mxu0 0.0
    %291 = vmatpush1.msra.mxu0 0.0
    %292 = vmatprep.subr.mxu0 0.0
    %293 = vmatpush1.msra.mxu0 0.0
    %294 = vmatprep.subr.mxu0 0.0
    %295 = vmatpush1.msra.mxu0 0.0
    %296 = vmatprep.subr.mxu0 0.0
    %297 = vmatpush1.msra.mxu0 0.0
    %298 = vmatprep.subr.mxu0 0.0
    %299 = vmatpush1.msra.mxu0 0.0
    %300 = vmatprep.subr.mxu0 0.0
    %301 = vmatpush1.msra.mxu0 0.0
    %302 = vmatprep.subr.mxu0 0.0
    %303 = vmatpush1.msra.mxu0 0.0
    %304 = vmatprep.subr.mxu0 0.0
    %305 = vmatpush1.msra.mxu0 0.0
    %306 = vmatprep.subr.mxu0 0.0
    %307 = vmatpush1.msra.mxu0 0.0
    %308 = vmatprep.subr.mxu0 0.0
    %309 = vmatpush1.msra.mxu0 0.0
    %310 = vmatprep.subr.mxu0 0.0
    %311 = vmatpush1.msra.mxu0 0.0
    %312 = vmatprep.mubr.f32.mxu0 0.0
    %313 = vmatmul.mubr.f32.gmra.mrb[0].mxu0 %v246
    %v314 = vpop.f32.mrb[0].mxu0
    %v315 = vadd.f32 %v240, %v314
    %v316 = vpop.f32.mrb[0].mxu0
    %317 = vdwg.mxu0
    %v318 = vmul.f32 %v315, %v315
    %v319 = vmul.f32 %v315, %v318
    %v320 = vmul.f32 %v319, 0.044715
    %v321 = vadd.f32 %v315, %v320
    %v322 = vmul.f32 %v321, 0.7978846
    %v323 = vtanh.pop %v322
    %v324 = vadd.f32 %v323, 1.0
    %v325 = vmul.f32 %v324, 0.5
    %v326 = vmul.f32 %v315, %v325
    %v327 = vld [vmem:[#allocation8] sm:$0xff]
    %v328 = vld [vmem:[#allocation8 + $0x8] sm:$0xff]
    %v329 = vld [vmem:[#allocation8 + $0x10] sm:$0xff]
    %v330 = vld [vmem:[#allocation8 + $0x18] sm:$0xff]
    %v331 = vld [vmem:[#allocation8 + $0x20] sm:$0xff]
    %v332 = vld [vmem:[#allocation8 + $0x28] sm:$0xff]
    %v333 = vld [vmem:[#allocation8 + $0x30] sm:$0xff]
    %v334 = vld [vmem:[#allocation8 + $0x38] sm:$0xff]
    %v335 = vld [vmem:[#allocation8 + $0x40] sm:$0xff]
    %v336 = vld [vmem:[#allocation8 + $0x48] sm:$0xff]
    %v337 = vld [vmem:[#allocation8 + $0x50] sm:$0xff]
    %v338 = vld [vmem:[#allocation8 + $0x58] sm:$0xff]
    %v339 = vld [vmem:[#allocation8 + $0x60] sm:$0xff]
    %v340 = vld [vmem:[#allocation8 + $0x68] sm:$0xff]
    %v341 = vld [vmem:[#allocation8 + $0x70] sm:$0xff]
    %v342 = vld [vmem:[#allocation8 + $0x78] sm:$0xff]
    %v343 = vld [vmem:[%s5] sm:$0x1]
    %v345 = vlaneseq
    %v346 = vshrl.u32 %v345, 7
    %v347 = vsub.s32 0, %v346
    %v348 = vrot.slane %v343, %v347
    %350 = vmatprep.subr.mxu0 0.0
    %351 = vmatpush1.msra.mxu0 %v327
    %352 = vmatprep.subr.mxu0 0.0
    %353 = vmatpush1.msra.mxu0 %v328
    %354 = vmatprep.subr.mxu0 0.0
    %355 = vmatpush1.msra.mxu0 %v329
    %356 = vmatprep.subr.mxu0 0.0
    %357 = vmatpush1.msra.mxu0 %v330
    %358 = vmatprep.subr.mxu0 0.0
    %359 = vmatpush1.msra.mxu0 %v331
    %360 = vmatprep.subr.mxu0 0.0
    %361 = vmatpush1.msra.mxu0 %v332
    %362 = vmatprep.subr.mxu0 0.0
    %363 = vmatpush1.msra.mxu0 %v333
    %364 = vmatprep.subr.mxu0 0.0
    %365 = vmatpush1.msra.mxu0 %v334
    %366 = vmatprep.subr.mxu0 0.0
    %367 = vmatpush1.msra.mxu0 %v335
    %368 = vmatprep.subr.mxu0 0.0
    %369 = vmatpush1.msra.mxu0 %v336
    %370 = vmatprep.subr.mxu0 0.0
    %371 = vmatpush1.msra.mxu0 %v337
    %372 = vmatprep.subr.mxu0 0.0
    %373 = vmatpush1.msra.mxu0 %v338
    %374 = vmatprep.subr.mxu0 0.0
    %375 = vmatpush1.msra.mxu0 %v339
    %376 = vmatprep.subr.mxu0 0.0
    %377 = vmatpush1.msra.mxu0 %v340
    %378 = vmatprep.subr.mxu0 0.0
    %379 = vmatpush1.msra.mxu0 %v341
    %380 = vmatprep.subr.mxu0 0.0
    %381 = vmatpush1.msra.mxu0 %v342
    %382 = vmatprep.subr.mxu0 0.0
    %383 = vmatpush1.msra.mxu0 0.0
    %384 = vmatprep.subr.mxu0 0.0
    %385 = vmatpush1.msra.mxu0 0.0
    %386 = vmatprep.subr.mxu0 0.0
    %387 = vmatpush1.msra.mxu0 0.0
    %388 = vmatprep.subr.mxu0 0.0
    %389 = vmatpush1.msra.mxu0 0.0
    %390 = vmatprep.subr.mxu0 0.0
    %391 = vmatpush1.msra.mxu0 0.0
    %392 = vmatprep.subr.mxu0 0.0
    %393 = vmatpush1.msra.mxu0 0.0
    %394 = vmatprep.subr.mxu0 0.0
    %395 = vmatpush1.msra.mxu0 0.0
    %396 = vmatprep.subr.mxu0 0.0
    %397 = vmatpush1.msra.mxu0 0.0
    %398 = vmatprep.subr.mxu0 0.0
    %399 = vmatpush1.msra.mxu0 0.0
    %400 = vmatprep.subr.mxu0 0.0
    %401 = vmatpush1.msra.mxu0 0.0
    %402 = vmatprep.subr.mxu0 0.0
    %403 = vmatpush1.msra.mxu0 0.0
    %404 = vmatprep.subr.mxu0 0.0
    %405 = vmatpush1.msra.mxu0 0.0
    %406 = vmatprep.subr.mxu0 0.0
    %407 = vmatpush1.msra.mxu0 0.0
    %408 = vmatprep.subr.mxu0 0.0
    %409 = vmatpush1.msra.mxu0 0.0
    %410 = vmatprep.subr.mxu0 0.0
    %411 = vmatpush1.msra.mxu0 0.0
    %412 = vmatprep.subr.mxu0 0.0
    %413 = vmatpush1.msra.mxu0 0.0
    %414 = vmatprep.mubr.f32.mxu0 0.0
    %415 = vmatmul.mubr.f32.gmra.mrb[0].mxu0 %v326
    %v416 = vpop.f32.mrb[0].mxu0
    %v417 = vadd.f32 %v348, %v416
    %v418 = vpop.f32.mrb[0].mxu0
    %419 = vdwg.mxu0
    %v420 = vld [vmem:[%s6] sm:$0xff]
    %v421 = vld [vmem:[%s6 + $0x8] sm:$0xff]
    %v422 = vld [vmem:[%s6 + $0x10] sm:$0xff]
    %v423 = vld [vmem:[%s6 + $0x18] sm:$0xff]
    %v424 = vld [vmem:[%s6 + $0x20] sm:$0xff]
    %v425 = vld [vmem:[%s6 + $0x28] sm:$0xff]
    %v426 = vld [vmem:[%s6 + $0x30] sm:$0xff]
    %v427 = vld [vmem:[%s6 + $0x38] sm:$0xff]
    %v428 = vld [vmem:[%s6 + $0x40] sm:$0xff]
    %v429 = vld [vmem:[%s6 + $0x48] sm:$0xff]
    %v430 = vld [vmem:[%s6 + $0x50] sm:$0xff]
    %v431 = vld [vmem:[%s6 + $0x58] sm:$0xff]
    %v432 = vld [vmem:[%s6 + $0x60] sm:$0xff]
    %v433 = vld [vmem:[%s6 + $0x68] sm:$0xff]
    %v434 = vld [vmem:[%s6 + $0x70] sm:$0xff]
    %v435 = vld [vmem:[%s6 + $0x78] sm:$0xff]
    %v436 = vld [vmem:[%s7] sm:$0x1]
    %v438 = vlaneseq
    %v439 = vshrl.u32 %v438, 7
    %v440 = vsub.s32 0, %v439
    %v441 = vrot.slane %v436, %v440
    %443 = vmatprep.subr.mxu0 0.0
    %444 = vmatpush1.msra.mxu0 %v420
    %445 = vmatprep.subr.mxu0 0.0
    %446 = vmatpush1.msra.mxu0 %v421
    %447 = vmatprep.subr.mxu0 0.0
    %448 = vmatpush1.msra.mxu0 %v422
    %449 = vmatprep.subr.mxu0 0.0
    %450 = vmatpush1.msra.mxu0 %v423
    %451 = vmatprep.subr.mxu0 0.0
    %452 = vmatpush1.msra.mxu0 %v424
    %453 = vmatprep.subr.mxu0 0.0
    %454 = vmatpush1.msra.mxu0 %v425
    %455 = vmatprep.subr.mxu0 0.0
    %456 = vmatpush1.msra.mxu0 %v426
    %457 = vmatprep.subr.mxu0 0.0
    %458 = vmatpush1.msra.mxu0 %v427
    %459 = vmatprep.subr.mxu0 0.0
    %460 = vmatpush1.msra.mxu0 %v428
    %461 = vmatprep.subr.mxu0 0.0
    %462 = vmatpush1.msra.mxu0 %v429
    %463 = vmatprep.subr.mxu0 0.0
    %464 = vmatpush1.msra.mxu0 %v430
    %465 = vmatprep.subr.mxu0 0.0
    %466 = vmatpush1.msra.mxu0 %v431
    %467 = vmatprep.subr.mxu0 0.0
    %468 = vmatpush1.msra.mxu0 %v432
    %469 = vmatprep.subr.mxu0 0.0
    %470 = vmatpush1.msra.mxu0 %v433
    %471 = vmatprep.subr.mxu0 0.0
    %472 = vmatpush1.msra.mxu0 %v434
    %473 = vmatprep.subr.mxu0 0.0
    %474 = vmatpush1.msra.mxu0 %v435
    %475 = vmatprep.subr.mxu0 0.0
    %476 = vmatpush1.msra.mxu0 0.0
    %477 = vmatprep.subr.mxu0 0.0
    %478 = vmatpush1.msra.mxu0 0.0
    %479 = vmatprep.subr.mxu0 0.0
    %480 = vmatpush1.msra.mxu0 0.0
    %481 = vmatprep.subr.mxu0 0.0
    %482 = vmatpush1.msra.mxu0 0.0
    %483 = vmatprep.subr.mxu0 0.0
    %484 = vmatpush1.msra.mxu0 0.0
    %485 = vmatprep.subr.mxu0 0.0
    %486 = vmatpush1.msra.mxu0 0.0
    %487 = vmatprep.subr.mxu0 0.0
    %488 = vmatpush1.msra.mxu0 0.0
    %489 = vmatprep.subr.mxu0 0.0
    %490 = vmatpush1.msra.mxu0 0.0
    %491 = vmatprep.subr.mxu0 0.0
    %492 = vmatpush1.msra.mxu0 0.0
    %493 = vmatprep.subr.mxu0 0.0
    %494 = vmatpush1.msra.mxu0 0.0
    %495 = vmatprep.subr.mxu0 0.0
    %496 = vmatpush1.msra.mxu0 0.0
    %497 = vmatprep.subr.mxu0 0.0
    %498 = vmatpush1.msra.mxu0 0.0
    %499 = vmatprep.subr.mxu0 0.0
    %500 = vmatpush1.msra.mxu0 0.0
    %501 = vmatprep.subr.mxu0 0.0
    %502 = vmatpush1.msra.mxu0 0.0
    %503 = vmatprep.subr.mxu0 0.0
    %504 = vmatpush1.msra.mxu0 0.0
    %505 = vmatprep.subr.mxu0 0.0
    %506 = vmatpush1.msra.mxu0 0.0
    %507 = vmatprep.mubr.f32.mxu0 0.0
    %508 = vmatmul.mubr.f32.gmra.mrb[0].mxu0 %v417
    %v509 = vpop.f32.mrb[0].mxu0
    %v510 = vadd.f32 %v441, %v509
    %v511 = vpop.f32.mrb[0].mxu0
    %512 = vdwg.mxu0
    %v513 = vld [vmem:[%s1] sm:$0x7f]
    %v514 = vld [vmem:[%s1 + $0x8] sm:$0x7f]
    %515 = vst [vmem:[#allocation2] sm:$0x7f] %v513
    %516 = vst [vmem:[#allocation2 + $0x8] sm:$0x7f] %v514
    %v519 = vunpack.c.l.s4 1966171168
    %v520 = vunpack.c.0.s8 %v519
    %v521 = vlaneseq
    %v522 = vshrl.u32 %v521, 7
    %v523 = vsub.s32 %v520, %v522
    %v524 = vrot.slane %v510, %v523
    %v525 = vcombine.high %v524, %v524
    %v527 = vunpack.c.l.s4 1966171168
    %v528 = vunpack.c.0.s8 %v527
    %v529 = vlaneseq
    %v530 = vshrl.u32 %v529, 7
    %v531 = vsub.s32 %v528, %v530
    %v532 = vrot.slane %v524, %v531
    %v534 = vunpack.c.l.s4 1966171168
    %v535 = vunpack.c.0.s8 %v534
    %v536 = vlaneseq
    %v537 = vshrl.u32 %v536, 7
    %v538 = vsub.s32 %v535, %v537
    %v539 = vrot.slane %v525, %v538
    %542 = vst [vmem:[#allocation2 + $0x7] sm:$0x1] %v532
    %543 = vst [vmem:[#allocation2 + $0xf] sm:$0x1] %v539
    %v544 = vld [vmem:[#allocation2] sm:$0xff]
    %v545 = vld [vmem:[#allocation2 + $0x8] sm:$0xff]
    %v546 = vmul.f32 %v544, %v544
    %v547 = vmul.f32 %v545, %v545
    %548 = vadd.xlane.f32.xlu0 %v546
    %v549 = vpop.xlane.xlu0 %548
    %550 = vadd.xlane.f32.xlu0 %v547
    %v551 = vpop.xlane.xlu0 %550
    %v552 = vrcp.pop 128.0
    %v553 = vmul.f32 %v549, %v552
    %v554 = vmul.f32 %v551, %v552
    %v555 = vadd.f32 %v553, 1e-06
    %v556 = vadd.f32 %v554, 1e-06
    %v557 = vrsqrt.pop %v555
    %v558 = vrsqrt.pop %v556
    %v559 = vmul.f32 %v544, %v557
    %v560 = vmul.f32 %v545, %v558
    %v561 = vld [vmem:[#allocation14] sm:$0x1]
    %v563 = vlaneseq
    %v564 = vshrl.u32 %v563, 7
    %v565 = vsub.s32 0, %v564
    %v566 = vrot.slane %v561, %v565
    %v568 = vmul.f32 %v559, %v566
    %v569 = vmul.f32 %v560, %v566
    %v570 = vld [vmem:[#allocation9] sm:$0xff]
    %v571 = vld [vmem:[#allocation9 + $0x8] sm:$0xff]
    %v572 = vld [vmem:[#allocation9 + $0x10] sm:$0xff]
    %v573 = vld [vmem:[#allocation9 + $0x18] sm:$0xff]
    %v574 = vld [vmem:[#allocation9 + $0x20] sm:$0xff]
    %v575 = vld [vmem:[#allocation9 + $0x28] sm:$0xff]
    %v576 = vld [vmem:[#allocation9 + $0x30] sm:$0xff]
    %v577 = vld [vmem:[#allocation9 + $0x38] sm:$0xff]
    %v578 = vld [vmem:[#allocation9 + $0x40] sm:$0xff]
    %v579 = vld [vmem:[#allocation9 + $0x48] sm:$0xff]
    %v580 = vld [vmem:[#allocation9 + $0x50] sm:$0xff]
    %v581 = vld [vmem:[#allocation9 + $0x58] sm:$0xff]
    %v582 = vld [vmem:[#allocation9 + $0x60] sm:$0xff]
    %v583 = vld [vmem:[#allocation9 + $0x68] sm:$0xff]
    %v584 = vld [vmem:[#allocation9 + $0x70] sm:$0xff]
    %v585 = vld [vmem:[#allocation9 + $0x78] sm:$0xff]
    %v586 = vld [vmem:[#allocation9 + $0x80] sm:$0xff]
    %v587 = vld [vmem:[#allocation9 + $0x88] sm:$0xff]
    %v588 = vld [vmem:[#allocation9 + $0x90] sm:$0xff]
    %v589 = vld [vmem:[#allocation9 + $0x98] sm:$0xff]
    %v590 = vld [vmem:[#allocation9 + $0xa0] sm:$0xff]
    %v591 = vld [vmem:[#allocation9 + $0xa8] sm:$0xff]
    %v592 = vld [vmem:[#allocation9 + $0xb0] sm:$0xff]
    %v593 = vld [vmem:[#allocation9 + $0xb8] sm:$0xff]
    %v594 = vld [vmem:[#allocation9 + $0xc0] sm:$0xff]
    %v595 = vld [vmem:[#allocation9 + $0xc8] sm:$0xff]
    %v596 = vld [vmem:[#allocation9 + $0xd0] sm:$0xff]
    %v597 = vld [vmem:[#allocation9 + $0xd8] sm:$0xff]
    %v598 = vld [vmem:[#allocation9 + $0xe0] sm:$0xff]
    %v599 = vld [vmem:[#allocation9 + $0xe8] sm:$0xff]
    %v600 = vld [vmem:[#allocation9 + $0xf0] sm:$0xff]
    %v601 = vld [vmem:[#allocation9 + $0xf8] sm:$0xff]
    %v602 = vld [vmem:[#allocation9 + $0x100] sm:$0xff]
    %v603 = vld [vmem:[#allocation9 + $0x108] sm:$0xff]
    %v604 = vld [vmem:[#allocation9 + $0x110] sm:$0xff]
    %v605 = vld [vmem:[#allocation9 + $0x118] sm:$0xff]
    %v606 = vld [vmem:[#allocation9 + $0x120] sm:$0xff]
    %v607 = vld [vmem:[#allocation9 + $0x128] sm:$0xff]
    %v608 = vld [vmem:[#allocation9 + $0x130] sm:$0xff]
    %v609 = vld [vmem:[#allocation9 + $0x138] sm:$0xff]
    %v610 = vld [vmem:[#allocation9 + $0x140] sm:$0xff]
    %v611 = vld [vmem:[#allocation9 + $0x148] sm:$0xff]
    %v612 = vld [vmem:[#allocation9 + $0x150] sm:$0xff]
    %v613 = vld [vmem:[#allocation9 + $0x158] sm:$0xff]
    %v614 = vld [vmem:[#allocation9 + $0x160] sm:$0xff]
    %v615 = vld [vmem:[#allocation9 + $0x168] sm:$0xff]
    %v616 = vld [vmem:[#allocation9 + $0x170] sm:$0xff]
    %v617 = vld [vmem:[#allocation9 + $0x178] sm:$0xff]
    %618 = vmatprep.subr.mxu0 %v571
    %619 = vmatpush1.msra.mxu0 %v570
    %620 = vmatprep.subr.mxu0 %v574
    %621 = vmatpush1.msra.mxu0 %v573
    %622 = vmatprep.subr.mxu0 %v577
    %623 = vmatpush1.msra.mxu0 %v576
    %624 = vmatprep.subr.mxu0 %v580
    %625 = vmatpush1.msra.mxu0 %v579
    %626 = vmatprep.subr.mxu0 %v583
    %627 = vmatpush1.msra.mxu0 %v582
    %628 = vmatprep.subr.mxu0 %v586
    %629 = vmatpush1.msra.mxu0 %v585
    %630 = vmatprep.subr.mxu0 %v589
    %631 = vmatpush1.msra.mxu0 %v588
    %632 = vmatprep.subr.mxu0 %v592
    %633 = vmatpush1.msra.mxu0 %v591
    %634 = vmatprep.subr.mxu0 %v595
    %635 = vmatpush1.msra.mxu0 %v594
    %636 = vmatprep.subr.mxu0 %v598
    %637 = vmatpush1.msra.mxu0 %v597
    %638 = vmatprep.subr.mxu0 %v601
    %639 = vmatpush1.msra.mxu0 %v600
    %640 = vmatprep.subr.mxu0 %v604
    %641 = vmatpush1.msra.mxu0 %v603
    %642 = vmatprep.subr.mxu0 %v607
    %643 = vmatpush1.msra.mxu0 %v606
    %644 = vmatprep.subr.mxu0 %v610
    %645 = vmatpush1.msra.mxu0 %v609
    %646 = vmatprep.subr.mxu0 %v613
    %647 = vmatpush1.msra.mxu0 %v612
    %648 = vmatprep.subr.mxu0 %v616
    %649 = vmatpush1.msra.mxu0 %v615
    %650 = vmatprep.subr.mxu0 0.0
    %651 = vmatpush1.msra.mxu0 0.0
    %652 = vmatprep.subr.mxu0 0.0
    %653 = vmatpush1.msra.mxu0 0.0
    %654 = vmatprep.subr.mxu0 0.0
    %655 = vmatpush1.msra.mxu0 0.0
    %656 = vmatprep.subr.mxu0 0.0
    %657 = vmatpush1.msra.mxu0 0.0
    %658 = vmatprep.subr.mxu0 0.0
    %659 = vmatpush1.msra.mxu0 0.0
    %660 = vmatprep.subr.mxu0 0.0
    %661 = vmatpush1.msra.mxu0 0.0
    %662 = vmatprep.subr.mxu0 0.0
    %663 = vmatpush1.msra.mxu0 0.0
    %664 = vmatprep.subr.mxu0 0.0
    %665 = vmatpush1.msra.mxu0 0.0
    %666 = vmatprep.subr.mxu0 0.0
    %667 = vmatpush1.msra.mxu0 0.0
    %668 = vmatprep.subr.mxu0 0.0
    %669 = vmatpush1.msra.mxu0 0.0
    %670 = vmatprep.subr.mxu0 0.0
    %671 = vmatpush1.msra.mxu0 0.0
    %672 = vmatprep.subr.mxu0 0.0
    %673 = vmatpush1.msra.mxu0 0.0
    %674 = vmatprep.subr.mxu0 0.0
    %675 = vmatpush1.msra.mxu0 0.0
    %676 = vmatprep.subr.mxu0 0.0
    %677 = vmatpush1.msra.mxu0 0.0
    %678 = vmatprep.subr.mxu0 0.0
    %679 = vmatpush1.msra.mxu0 0.0
    %680 = vmatprep.subr.mxu0 0.0
    %681 = vmatpush1.msra.mxu0 0.0
    %682 = vmatprep.mubr.f32.mxu0 0.0
    %683 = vmatmul.mubr.f32.gmra.mrb[0].mxu0 %v568
    %v684 = vpop.f32.mrb[0].mxu0
    %v685 = vadd.f32 0.0, %v684
    %v686 = vpop.f32.mrb[0].mxu0
    %v687 = vadd.f32 0.0, %v686
    %688 = vmatprep.mubr.f32.mxu0 0.0
    %689 = vmatmul.mubr.f32.gmra.mrb[0].mxu0 %v569
    %v690 = vpop.f32.mrb[0].mxu0
    %v691 = vadd.f32 0.0, %v690
    %v692 = vpop.f32.mrb[0].mxu0
    %v693 = vadd.f32 0.0, %v692
    %694 = vdwg.mxu0
    %695 = vmatprep.subr.mxu0 0.0
    %696 = vmatpush1.msra.mxu0 %v572
    %697 = vmatprep.subr.mxu0 0.0
    %698 = vmatpush1.msra.mxu0 %v575
    %699 = vmatprep.subr.mxu0 0.0
    %700 = vmatpush1.msra.mxu0 %v578
    %701 = vmatprep.subr.mxu0 0.0
    %702 = vmatpush1.msra.mxu0 %v581
    %703 = vmatprep.subr.mxu0 0.0
    %704 = vmatpush1.msra.mxu0 %v584
    %705 = vmatprep.subr.mxu0 0.0
    %706 = vmatpush1.msra.mxu0 %v587
    %707 = vmatprep.subr.mxu0 0.0
    %708 = vmatpush1.msra.mxu0 %v590
    %709 = vmatprep.subr.mxu0 0.0
    %710 = vmatpush1.msra.mxu0 %v593
    %711 = vmatprep.subr.mxu0 0.0
    %712 = vmatpush1.msra.mxu0 %v596
    %713 = vmatprep.subr.mxu0 0.0
    %714 = vmatpush1.msra.mxu0 %v599
    %715 = vmatprep.subr.mxu0 0.0
    %716 = vmatpush1.msra.mxu0 %v602
    %717 = vmatprep.subr.mxu0 0.0
    %718 = vmatpush1.msra.mxu0 %v605
    %719 = vmatprep.subr.mxu0 0.0
    %720 = vmatpush1.msra.mxu0 %v608
    %721 = vmatprep.subr.mxu0 0.0
    %722 = vmatpush1.msra.mxu0 %v611
    %723 = vmatprep.subr.mxu0 0.0
    %724 = vmatpush1.msra.mxu0 %v614
    %725 = vmatprep.subr.mxu0 0.0
    %726 = vmatpush1.msra.mxu0 %v617
    %727 = vmatprep.subr.mxu0 0.0
    %728 = vmatpush1.msra.mxu0 0.0
    %729 = vmatprep.subr.mxu0 0.0
    %730 = vmatpush1.msra.mxu0 0.0
    %731 = vmatprep.subr.mxu0 0.0
    %732 = vmatpush1.msra.mxu0 0.0
    %733 = vmatprep.subr.mxu0 0.0
    %734 = vmatpush1.msra.mxu0 0.0
    %735 = vmatprep.subr.mxu0 0.0
    %736 = vmatpush1.msra.mxu0 0.0
    %737 = vmatprep.subr.mxu0 0.0
    %738 = vmatpush1.msra.mxu0 0.0
    %739 = vmatprep.subr.mxu0 0.0
    %740 = vmatpush1.msra.mxu0 0.0
    %741 = vmatprep.subr.mxu0 0.0
    %742 = vmatpush1.msra.mxu0 0.0
    %743 = vmatprep.subr.mxu0 0.0
    %744 = vmatpush1.msra.mxu0 0.0
    %745 = vmatprep.subr.mxu0 0.0
    %746 = vmatpush1.msra.mxu0 0.0
    %747 = vmatprep.subr.mxu0 0.0
    %748 = vmatpush1.msra.mxu0 0.0
    %749 = vmatprep.subr.mxu0 0.0
    %750 = vmatpush1.msra.mxu0 0.0
    %751 = vmatprep.subr.mxu0 0.0
    %752 = vmatpush1.msra.mxu0 0.0
    %753 = vmatprep.subr.mxu0 0.0
    %754 = vmatpush1.msra.mxu0 0.0
    %755 = vmatprep.subr.mxu0 0.0
    %756 = vmatpush1.msra.mxu0 0.0
    %757 = vmatprep.subr.mxu0 0.0
    %758 = vmatpush1.msra.mxu0 0.0
    %759 = vmatprep.mubr.f32.mxu0 0.0
    %760 = vmatmul.mubr.f32.gmra.mrb[0].mxu0 %v568
    %v761 = vpop.f32.mrb[0].mxu0
    %v762 = vadd.f32 0.0, %v761
    %v763 = vpop.f32.mrb[0].mxu0
    %764 = vmatprep.mubr.f32.mxu0 0.0
    %765 = vmatmul.mubr.f32.gmra.mrb[0].mxu0 %v569
    %v766 = vpop.f32.mrb[0].mxu0
    %v767 = vadd.f32 0.0, %v766
    %v768 = vpop.f32.mrb[0].mxu0
    %769 = vdwg.mxu0
    %770 = vmatprep.subr.mxu0 0.0
    %771 = vmatpush1.xpose.msra.mxu0 %v687
    %772 = vmatprep.subr.mxu0 0.0
    %773 = vmatpush1.xpose.msra.mxu0 0.0
    %774 = vmatprep.subr.mxu0 0.0
    %775 = vmatpush1.xpose.msra.mxu0 0.0
    %776 = vmatprep.subr.mxu0 0.0
    %777 = vmatpush1.xpose.msra.mxu0 0.0
    %778 = vmatprep.subr.mxu0 0.0
    %779 = vmatpush1.xpose.msra.mxu0 0.0
    %780 = vmatprep.subr.mxu0 0.0
    %781 = vmatpush1.xpose.msra.mxu0 0.0
    %782 = vmatprep.subr.mxu0 0.0
    %783 = vmatpush1.xpose.msra.mxu0 0.0
    %784 = vmatprep.subr.mxu0 0.0
    %785 = vmatpush1.xpose.msra.mxu0 0.0
    %786 = vmatprep.subr.mxu0 0.0
    %787 = vmatpush1.xpose.msra.mxu0 0.0
    %788 = vmatprep.subr.mxu0 0.0
    %789 = vmatpush1.xpose.msra.mxu0 0.0
    %790 = vmatprep.subr.mxu0 0.0
    %791 = vmatpush1.xpose.msra.mxu0 0.0
    %792 = vmatprep.subr.mxu0 0.0
    %793 = vmatpush1.xpose.msra.mxu0 0.0
    %794 = vmatprep.subr.mxu0 0.0
    %795 = vmatpush1.xpose.msra.mxu0 0.0
    %796 = vmatprep.subr.mxu0 0.0
    %797 = vmatpush1.xpose.msra.mxu0 0.0
    %798 = vmatprep.subr.mxu0 0.0
    %799 = vmatpush1.xpose.msra.mxu0 0.0
    %800 = vmatprep.subr.mxu0 0.0
    %801 = vmatpush1.xpose.msra.mxu0 0.0
    %802 = vmatprep.subr.mxu0 0.0
    %803 = vmatpush1.xpose.msra.mxu0 0.0
    %804 = vmatprep.subr.mxu0 0.0
    %805 = vmatpush1.xpose.msra.mxu0 0.0
    %806 = vmatprep.subr.mxu0 0.0
    %807 = vmatpush1.xpose.msra.mxu0 0.0
    %808 = vmatprep.subr.mxu0 0.0
    %809 = vmatpush1.xpose.msra.mxu0 0.0
    %810 = vmatprep.subr.mxu0 0.0
    %811 = vmatpush1.xpose.msra.mxu0 0.0
    %812 = vmatprep.subr.mxu0 0.0
    %813 = vmatpush1.xpose.msra.mxu0 0.0
    %814 = vmatprep.subr.mxu0 0.0
    %815 = vmatpush1.xpose.msra.mxu0 0.0
    %816 = vmatprep.subr.mxu0 0.0
    %817 = vmatpush1.xpose.msra.mxu0 0.0
    %818 = vmatprep.subr.mxu0 0.0
    %819 = vmatpush1.xpose.msra.mxu0 0.0
    %820 = vmatprep.subr.mxu0 0.0
    %821 = vmatpush1.xpose.msra.mxu0 0.0
    %822 = vmatprep.subr.mxu0 0.0
    %823 = vmatpush1.xpose.msra.mxu0 0.0
    %824 = vmatprep.subr.mxu0 0.0
    %825 = vmatpush1.xpose.msra.mxu0 0.0
    %826 = vmatprep.subr.mxu0 0.0
    %827 = vmatpush1.xpose.msra.mxu0 0.0
    %828 = vmatprep.subr.mxu0 0.0
    %829 = vmatpush1.xpose.msra.mxu0 0.0
    %830 = vmatprep.subr.mxu0 0.0
    %831 = vmatpush1.xpose.msra.mxu0 0.0
    %832 = vmatprep.subr.mxu0 0.0
    %833 = vmatpush1.xpose.msra.mxu0 0.0
    %834 = vmatprep.mubr.f32.mxu0 0.0
    %835 = vmatmul.mubr.f32.gmra.mrb[0].mxu0 %v685
    %v836 = vpop.f32.mrb[0].mxu0
    %v837 = vadd.f32 0.0, %v836
    %v838 = vpop.f32.mrb[0].mxu0
    %839 = vdwg.mxu0
    %840 = vmatprep.subr.mxu0 0.0
    %841 = vmatpush1.xpose.msra.mxu0 %v693
    %842 = vmatprep.subr.mxu0 0.0
    %843 = vmatpush1.xpose.msra.mxu0 0.0
    %844 = vmatprep.subr.mxu0 0.0
    %845 = vmatpush1.xpose.msra.mxu0 0.0
    %846 = vmatprep.subr.mxu0 0.0
    %847 = vmatpush1.xpose.msra.mxu0 0.0
    %848 = vmatprep.subr.mxu0 0.0
    %849 = vmatpush1.xpose.msra.mxu0 0.0
    %850 = vmatprep.subr.mxu0 0.0
    %851 = vmatpush1.xpose.msra.mxu0 0.0
    %852 = vmatprep.subr.mxu0 0.0
    %853 = vmatpush1.xpose.msra.mxu0 0.0
    %854 = vmatprep.subr.mxu0 0.0
    %855 = vmatpush1.xpose.msra.mxu0 0.0
    %856 = vmatprep.subr.mxu0 0.0
    %857 = vmatpush1.xpose.msra.mxu0 0.0
    %858 = vmatprep.subr.mxu0 0.0
    %859 = vmatpush1.xpose.msra.mxu0 0.0
    %860 = vmatprep.subr.mxu0 0.0
    %861 = vmatpush1.xpose.msra.mxu0 0.0
    %862 = vmatprep.subr.mxu0 0.0
    %863 = vmatpush1.xpose.msra.mxu0 0.0
    %864 = vmatprep.subr.mxu0 0.0
    %865 = vmatpush1.xpose.msra.mxu0 0.0
    %866 = vmatprep.subr.mxu0 0.0
    %867 = vmatpush1.xpose.msra.mxu0 0.0
    %868 = vmatprep.subr.mxu0 0.0
    %869 = vmatpush1.xpose.msra.mxu0 0.0
    %870 = vmatprep.subr.mxu0 0.0
    %871 = vmatpush1.xpose.msra.mxu0 0.0
    %872 = vmatprep.subr.mxu0 0.0
    %873 = vmatpush1.xpose.msra.mxu0 0.0
    %874 = vmatprep.subr.mxu0 0.0
    %875 = vmatpush1.xpose.msra.mxu0 0.0
    %876 = vmatprep.subr.mxu0 0.0
    %877 = vmatpush1.xpose.msra.mxu0 0.0
    %878 = vmatprep.subr.mxu0 0.0
    %879 = vmatpush1.xpose.msra.mxu0 0.0
    %880 = vmatprep.subr.mxu0 0.0
    %881 = vmatpush1.xpose.msra.mxu0 0.0
    %882 = vmatprep.subr.mxu0 0.0
    %883 = vmatpush1.xpose.msra.mxu0 0.0
    %884 = vmatprep.subr.mxu0 0.0
    %885 = vmatpush1.xpose.msra.mxu0 0.0
    %886 = vmatprep.subr.mxu0 0.0
    %887 = vmatpush1.xpose.msra.mxu0 0.0
    %888 = vmatprep.subr.mxu0 0.0
    %889 = vmatpush1.xpose.msra.mxu0 0.0
    %890 = vmatprep.subr.mxu0 0.0
    %891 = vmatpush1.xpose.msra.mxu0 0.0
    %892 = vmatprep.subr.mxu0 0.0
    %893 = vmatpush1.xpose.msra.mxu0 0.0
    %894 = vmatprep.subr.mxu0 0.0
    %895 = vmatpush1.xpose.msra.mxu0 0.0
    %896 = vmatprep.subr.mxu0 0.0
    %897 = vmatpush1.xpose.msra.mxu0 0.0
    %898 = vmatprep.subr.mxu0 0.0
    %899 = vmatpush1.xpose.msra.mxu0 0.0
    %900 = vmatprep.subr.mxu0 0.0
    %901 = vmatpush1.xpose.msra.mxu0 0.0
    %902 = vmatprep.subr.mxu0 0.0
    %903 = vmatpush1.xpose.msra.mxu0 0.0
    %904 = vmatprep.mubr.f32.mxu0 0.0
    %905 = vmatmul.mubr.f32.gmra.mrb[0].mxu0 %v691
    %v906 = vpop.f32.mrb[0].mxu0
    %v907 = vadd.f32 0.0, %v906
    %v908 = vpop.f32.mrb[0].mxu0
    %909 = vdwg.mxu0
    %v910 = vmul.f32 %v837, 0.088388346
    %v911 = vmul.f32 %v907, 0.088388346
    %v912 = vlaneseq
    %v913 = vshrl.u32 %v912, 7
    %v914 = vlaneseq
    %v915 = vand.u32 %v914, 127
    %vm916 = vcmp.le.s32.totalorder %v915, %v913
    %v917 = vsel %vm916, %v910, -1e+30
    %v918 = vsel %vm916, %v911, -1e+30
    %vm919 = vcmask 64512
    %v920 = vsel %vm919, %v917, -inf
    %921 = vmax.xlane.f32.xlu0 %v920
    %v922 = vpop.xlane.xlu0 %921
    %v923 = vsel %vm919, %v918, -inf
    %924 = vmax.xlane.f32.xlu0 %v923
    %v925 = vpop.xlane.xlu0 %924
    %v926 = vsub.f32 %v917, %v922
    %v927 = vsub.f32 %v918, %v925
    %v928 = vmul.f32 %v926, 1.442695
    %v929 = vpow.pop %v928
    %v930 = vmul.f32 %v927, 1.442695
    %v931 = vpow.pop %v930
    %v932 = vsel %vm919, %v929, 0.0
    %933 = vadd.xlane.f32.xlu0 %v932
    %v934 = vpop.xlane.xlu0 %933
    %v935 = vsel %vm919, %v931, 0.0
    %936 = vadd.xlane.f32.xlu0 %v935
    %v937 = vpop.xlane.xlu0 %936
    %v938 = vrcp.pop %v934
    %v939 = vrcp.pop %v937
    %v940 = vmul.f32 %v929, %v938
    %v941 = vmul.f32 %v931, %v939
    %v943 = vsel %vm919, %v940, 0
    %945 = vmatprep.subr.mxu0 0.0
    %946 = vmatpush1.msra.mxu0 %v762
    %947 = vmatprep.subr.mxu0 0.0
    %948 = vmatpush1.msra.mxu0 0.0
    %949 = vmatprep.subr.mxu0 0.0
    %950 = vmatpush1.msra.mxu0 0.0
    %951 = vmatprep.subr.mxu0 0.0
    %952 = vmatpush1.msra.mxu0 0.0
    %953 = vmatprep.subr.mxu0 0.0
    %954 = vmatpush1.msra.mxu0 0.0
    %955 = vmatprep.subr.mxu0 0.0
    %956 = vmatpush1.msra.mxu0 0.0
    %957 = vmatprep.subr.mxu0 0.0
    %958 = vmatpush1.msra.mxu0 0.0
    %959 = vmatprep.subr.mxu0 0.0
    %960 = vmatpush1.msra.mxu0 0.0
    %961 = vmatprep.subr.mxu0 0.0
    %962 = vmatpush1.msra.mxu0 0.0
    %963 = vmatprep.subr.mxu0 0.0
    %964 = vmatpush1.msra.mxu0 0.0
    %965 = vmatprep.subr.mxu0 0.0
    %966 = vmatpush1.msra.mxu0 0.0
    %967 = vmatprep.subr.mxu0 0.0
    %968 = vmatpush1.msra.mxu0 0.0
    %969 = vmatprep.subr.mxu0 0.0
    %970 = vmatpush1.msra.mxu0 0.0
    %971 = vmatprep.subr.mxu0 0.0
    %972 = vmatpush1.msra.mxu0 0.0
    %973 = vmatprep.subr.mxu0 0.0
    %974 = vmatpush1.msra.mxu0 0.0
    %975 = vmatprep.subr.mxu0 0.0
    %976 = vmatpush1.msra.mxu0 0.0
    %977 = vmatprep.subr.mxu0 0.0
    %978 = vmatpush1.msra.mxu0 0.0
    %979 = vmatprep.subr.mxu0 0.0
    %980 = vmatpush1.msra.mxu0 0.0
    %981 = vmatprep.subr.mxu0 0.0
    %982 = vmatpush1.msra.mxu0 0.0
    %983 = vmatprep.subr.mxu0 0.0
    %984 = vmatpush1.msra.mxu0 0.0
    %985 = vmatprep.subr.mxu0 0.0
    %986 = vmatpush1.msra.mxu0 0.0
    %987 = vmatprep.subr.mxu0 0.0
    %988 = vmatpush1.msra.mxu0 0.0
    %989 = vmatprep.subr.mxu0 0.0
    %990 = vmatpush1.msra.mxu0 0.0
    %991 = vmatprep.subr.mxu0 0.0
    %992 = vmatpush1.msra.mxu0 0.0
    %993 = vmatprep.subr.mxu0 0.0
    %994 = vmatpush1.msra.mxu0 0.0
    %995 = vmatprep.subr.mxu0 0.0
    %996 = vmatpush1.msra.mxu0 0.0
    %997 = vmatprep.subr.mxu0 0.0
    %998 = vmatpush1.msra.mxu0 0.0
    %999 = vmatprep.subr.mxu0 0.0
    %1000 = vmatpush1.msra.mxu0 0.0
    %1001 = vmatprep.subr.mxu0 0.0
    %1002 = vmatpush1.msra.mxu0 0.0
    %1003 = vmatprep.subr.mxu0 0.0
    %1004 = vmatpush1.msra.mxu0 0.0
    %1005 = vmatprep.subr.mxu0 0.0
    %1006 = vmatpush1.msra.mxu0 0.0
    %1007 = vmatprep.subr.mxu0 0.0
    %1008 = vmatpush1.msra.mxu0 0.0
    %1009 = vmatprep.mubr.f32.mxu0 0.0
    %1010 = vmatmul.mubr.f32.gmra.mrb[0].mxu0 %v943
    %v1011 = vpop.f32.mrb[0].mxu0
    %v1012 = vadd.f32 0.0, %v1011
    %v1013 = vpop.f32.mrb[0].mxu0
    %1014 = vdwg.mxu0
    %v1016 = vsel %vm919, %v941, 0
    %1018 = vmatprep.subr.mxu0 0.0
    %1019 = vmatpush1.msra.mxu0 %v767
    %1020 = vmatprep.subr.mxu0 0.0
    %1021 = vmatpush1.msra.mxu0 0.0
    %1022 = vmatprep.subr.mxu0 0.0
    %1023 = vmatpush1.msra.mxu0 0.0
    %1024 = vmatprep.subr.mxu0 0.0
    %1025 = vmatpush1.msra.mxu0 0.0
    %1026 = vmatprep.subr.mxu0 0.0
    %1027 = vmatpush1.msra.mxu0 0.0
    %1028 = vmatprep.subr.mxu0 0.0
    %1029 = vmatpush1.msra.mxu0 0.0
    %1030 = vmatprep.subr.mxu0 0.0
    %1031 = vmatpush1.msra.mxu0 0.0
    %1032 = vmatprep.subr.mxu0 0.0
    %1033 = vmatpush1.msra.mxu0 0.0
    %1034 = vmatprep.subr.mxu0 0.0
    %1035 = vmatpush1.msra.mxu0 0.0
    %1036 = vmatprep.subr.mxu0 0.0
    %1037 = vmatpush1.msra.mxu0 0.0
    %1038 = vmatprep.subr.mxu0 0.0
    %1039 = vmatpush1.msra.mxu0 0.0
    %1040 = vmatprep.subr.mxu0 0.0
    %1041 = vmatpush1.msra.mxu0 0.0
    %1042 = vmatprep.subr.mxu0 0.0
    %1043 = vmatpush1.msra.mxu0 0.0
    %1044 = vmatprep.subr.mxu0 0.0
    %1045 = vmatpush1.msra.mxu0 0.0
    %1046 = vmatprep.subr.mxu0 0.0
    %1047 = vmatpush1.msra.mxu0 0.0
    %1048 = vmatprep.subr.mxu0 0.0
    %1049 = vmatpush1.msra.mxu0 0.0
    %1050 = vmatprep.subr.mxu0 0.0
    %1051 = vmatpush1.msra.mxu0 0.0
    %1052 = vmatprep.subr.mxu0 0.0
    %1053 = vmatpush1.msra.mxu0 0.0
    %1054 = vmatprep.subr.mxu0 0.0
    %1055 = vmatpush1.msra.mxu0 0.0
    %1056 = vmatprep.subr.mxu0 0.0
    %1057 = vmatpush1.msra.mxu0 0.0
    %1058 = vmatprep.subr.mxu0 0.0
    %1059 = vmatpush1.msra.mxu0 0.0
    %1060 = vmatprep.subr.mxu0 0.0
    %1061 = vmatpush1.msra.mxu0 0.0
    %1062 = vmatprep.subr.mxu0 0.0
    %1063 = vmatpush1.msra.mxu0 0.0
    %1064 = vmatprep.subr.mxu0 0.0
    %1065 = vmatpush1.msra.mxu0 0.0
    %1066 = vmatprep.subr.mxu0 0.0
    %1067 = vmatpush1.msra.mxu0 0.0
    %1068 = vmatprep.subr.mxu0 0.0
    %1069 = vmatpush1.msra.mxu0 0.0
    %1070 = vmatprep.subr.mxu0 0.0
    %1071 = vmatpush1.msra.mxu0 0.0
    %1072 = vmatprep.subr.mxu0 0.0
    %1073 = vmatpush1.msra.mxu0 0.0
    %1074 = vmatprep.subr.mxu0 0.0
    %1075 = vmatpush1.msra.mxu0 0.0
    %1076 = vmatprep.subr.mxu0 0.0
    %1077 = vmatpush1.msra.mxu0 0.0
    %1078 = vmatprep.subr.mxu0 0.0
    %1079 = vmatpush1.msra.mxu0 0.0
    %1080 = vmatprep.subr.mxu0 0.0
    %1081 = vmatpush1.msra.mxu0 0.0
    %1082 = vmatprep.mubr.f32.mxu0 0.0
    %1083 = vmatmul.mubr.f32.gmra.mrb[0].mxu0 %v1016
    %v1084 = vpop.f32.mrb[0].mxu0
    %v1085 = vadd.f32 0.0, %v1084
    %v1086 = vpop.f32.mrb[0].mxu0
    %1087 = vdwg.mxu0
    %v1088 = vld [vmem:[#allocation11] sm:$0xff]
    %v1089 = vld [vmem:[#allocation11 + $0x8] sm:$0xff]
    %v1090 = vld [vmem:[#allocation11 + $0x10] sm:$0xff]
    %v1091 = vld [vmem:[#allocation11 + $0x18] sm:$0xff]
    %v1092 = vld [vmem:[#allocation11 + $0x20] sm:$0xff]
    %v1093 = vld [vmem:[#allocation11 + $0x28] sm:$0xff]
    %v1094 = vld [vmem:[#allocation11 + $0x30] sm:$0xff]
    %v1095 = vld [vmem:[#allocation11 + $0x38] sm:$0xff]
    %v1096 = vld [vmem:[#allocation11 + $0x40] sm:$0xff]
    %v1097 = vld [vmem:[#allocation11 + $0x48] sm:$0xff]
    %v1098 = vld [vmem:[#allocation11 + $0x50] sm:$0xff]
    %v1099 = vld [vmem:[#allocation11 + $0x58] sm:$0xff]
    %v1100 = vld [vmem:[#allocation11 + $0x60] sm:$0xff]
    %v1101 = vld [vmem:[#allocation11 + $0x68] sm:$0xff]
    %v1102 = vld [vmem:[#allocation11 + $0x70] sm:$0xff]
    %v1103 = vld [vmem:[#allocation11 + $0x78] sm:$0xff]
    %1104 = vmatprep.subr.mxu0 0.0
    %1105 = vmatpush1.msra.mxu0 %v1088
    %1106 = vmatprep.subr.mxu0 0.0
    %1107 = vmatpush1.msra.mxu0 %v1089
    %1108 = vmatprep.subr.mxu0 0.0
    %1109 = vmatpush1.msra.mxu0 %v1090
    %1110 = vmatprep.subr.mxu0 0.0
    %1111 = vmatpush1.msra.mxu0 %v1091
    %1112 = vmatprep.subr.mxu0 0.0
    %1113 = vmatpush1.msra.mxu0 %v1092
    %1114 = vmatprep.subr.mxu0 0.0
    %1115 = vmatpush1.msra.mxu0 %v1093
    %1116 = vmatprep.subr.mxu0 0.0
    %1117 = vmatpush1.msra.mxu0 %v1094
    %1118 = vmatprep.subr.mxu0 0.0
    %1119 = vmatpush1.msra.mxu0 %v1095
    %1120 = vmatprep.subr.mxu0 0.0
    %1121 = vmatpush1.msra.mxu0 %v1096
    %1122 = vmatprep.subr.mxu0 0.0
    %1123 = vmatpush1.msra.mxu0 %v1097
    %1124 = vmatprep.subr.mxu0 0.0
    %1125 = vmatpush1.msra.mxu0 %v1098
    %1126 = vmatprep.subr.mxu0 0.0
    %1127 = vmatpush1.msra.mxu0 %v1099
    %1128 = vmatprep.subr.mxu0 0.0
    %1129 = vmatpush1.msra.mxu0 %v1100
    %1130 = vmatprep.subr.mxu0 0.0
    %1131 = vmatpush1.msra.mxu0 %v1101
    %1132 = vmatprep.subr.mxu0 0.0
    %1133 = vmatpush1.msra.mxu0 %v1102
    %1134 = vmatprep.subr.mxu0 0.0
    %1135 = vmatpush1.msra.mxu0 %v1103
    %1136 = vmatprep.subr.mxu0 0.0
    %1137 = vmatpush1.msra.mxu0 0.0
    %1138 = vmatprep.subr.mxu0 0.0
    %1139 = vmatpush1.msra.mxu0 0.0
    %1140 = vmatprep.subr.mxu0 0.0
    %1141 = vmatpush1.msra.mxu0 0.0
    %1142 = vmatprep.subr.mxu0 0.0
    %1143 = vmatpush1.msra.mxu0 0.0
    %1144 = vmatprep.subr.mxu0 0.0
    %1145 = vmatpush1.msra.mxu0 0.0
    %1146 = vmatprep.subr.mxu0 0.0
    %1147 = vmatpush1.msra.mxu0 0.0
    %1148 = vmatprep.subr.mxu0 0.0
    %1149 = vmatpush1.msra.mxu0 0.0
    %1150 = vmatprep.subr.mxu0 0.0
    %1151 = vmatpush1.msra.mxu0 0.0
    %1152 = vmatprep.subr.mxu0 0.0
    %1153 = vmatpush1.msra.mxu0 0.0
    %1154 = vmatprep.subr.mxu0 0.0
    %1155 = vmatpush1.msra.mxu0 0.0
    %1156 = vmatprep.subr.mxu0 0.0
    %1157 = vmatpush1.msra.mxu0 0.0
    %1158 = vmatprep.subr.mxu0 0.0
    %1159 = vmatpush1.msra.mxu0 0.0
    %1160 = vmatprep.subr.mxu0 0.0
    %1161 = vmatpush1.msra.mxu0 0.0
    %1162 = vmatprep.subr.mxu0 0.0
    %1163 = vmatpush1.msra.mxu0 0.0
    %1164 = vmatprep.subr.mxu0 0.0
    %1165 = vmatpush1.msra.mxu0 0.0
    %1166 = vmatprep.subr.mxu0 0.0
    %1167 = vmatpush1.msra.mxu0 0.0
    %1168 = vmatprep.mubr.f32.mxu0 0.0
    %1169 = vmatmul.mubr.f32.gmra.mrb[0].mxu0 %v1012
    %v1170 = vpop.f32.mrb[0].mxu0
    %v1171 = vadd.f32 0.0, %v1170
    %v1172 = vpop.f32.mrb[0].mxu0
    %1173 = vmatprep.mubr.f32.mxu0 0.0
    %1174 = vmatmul.mubr.f32.gmra.mrb[0].mxu0 %v1085
    %v1175 = vpop.f32.mrb[0].mxu0
    %v1176 = vadd.f32 0.0, %v1175
    %v1177 = vpop.f32.mrb[0].mxu0
    %1178 = vdwg.mxu0
    %v1179 = vadd.f32 %v544, %v1171
    %v1180 = vadd.f32 %v545, %v1176
    %v1181 = vmul.f32 %v1179, %v1179
    %v1182 = vmul.f32 %v1180, %v1180
    %1183 = vadd.xlane.f32.xlu0 %v1181
    %v1184 = vpop.xlane.xlu0 %1183
    %1185 = vadd.xlane.f32.xlu0 %v1182
    %v1186 = vpop.xlane.xlu0 %1185
    %v1187 = vmul.f32 %v1184, %v552
    %v1188 = vmul.f32 %v1186, %v552
    %v1189 = vadd.f32 %v1187, 1e-06
    %v1190 = vadd.f32 %v1188, 1e-06
    %v1191 = vrsqrt.pop %v1189
    %v1192 = vrsqrt.pop %v1190
    %v1193 = vmul.f32 %v1179, %v1191
    %v1194 = vmul.f32 %v1180, %v1192
    %v1195 = vld [vmem:[#allocation15] sm:$0x1]
    %v1197 = vlaneseq
    %v1198 = vshrl.u32 %v1197, 7
    %v1199 = vsub.s32 0, %v1198
    %v1200 = vrot.slane %v1195, %v1199
    %v1202 = vmul.f32 %v1193, %v1200
    %v1203 = vmul.f32 %v1194, %v1200
    %v1204 = vld [vmem:[#allocation12] sm:$0xff]
    %v1205 = vld [vmem:[#allocation12 + $0x8] sm:$0xff]
    %v1206 = vld [vmem:[#allocation12 + $0x10] sm:$0xff]
    %v1207 = vld [vmem:[#allocation12 + $0x18] sm:$0xff]
    %v1208 = vld [vmem:[#allocation12 + $0x20] sm:$0xff]
    %v1209 = vld [vmem:[#allocation12 + $0x28] sm:$0xff]
    %v1210 = vld [vmem:[#allocation12 + $0x30] sm:$0xff]
    %v1211 = vld [vmem:[#allocation12 + $0x38] sm:$0xff]
    %v1212 = vld [vmem:[#allocation12 + $0x40] sm:$0xff]
    %v1213 = vld [vmem:[#allocation12 + $0x48] sm:$0xff]
    %v1214 = vld [vmem:[#allocation12 + $0x50] sm:$0xff]
    %v1215 = vld [vmem:[#allocation12 + $0x58] sm:$0xff]
    %v1216 = vld [vmem:[#allocation12 + $0x60] sm:$0xff]
    %v1217 = vld [vmem:[#allocation12 + $0x68] sm:$0xff]
    %v1218 = vld [vmem:[#allocation12 + $0x70] sm:$0xff]
    %v1219 = vld [vmem:[#allocation12 + $0x78] sm:$0xff]
    %v1220 = vld [vmem:[#allocation12 + $0x80] sm:$0xff]
    %v1221 = vld [vmem:[#allocation12 + $0x88] sm:$0xff]
    %v1222 = vld [vmem:[#allocation12 + $0x90] sm:$0xff]
    %v1223 = vld [vmem:[#allocation12 + $0x98] sm:$0xff]
    %v1224 = vld [vmem:[#allocation12 + $0xa0] sm:$0xff]
    %v1225 = vld [vmem:[#allocation12 + $0xa8] sm:$0xff]
    %v1226 = vld [vmem:[#allocation12 + $0xb0] sm:$0xff]
    %v1227 = vld [vmem:[#allocation12 + $0xb8] sm:$0xff]
    %v1228 = vld [vmem:[#allocation12 + $0xc0] sm:$0xff]
    %v1229 = vld [vmem:[#allocation12 + $0xc8] sm:$0xff]
    %v1230 = vld [vmem:[#allocation12 + $0xd0] sm:$0xff]
    %v1231 = vld [vmem:[#allocation12 + $0xd8] sm:$0xff]
    %v1232 = vld [vmem:[#allocation12 + $0xe0] sm:$0xff]
    %v1233 = vld [vmem:[#allocation12 + $0xe8] sm:$0xff]
    %v1234 = vld [vmem:[#allocation12 + $0xf0] sm:$0xff]
    %v1235 = vld [vmem:[#allocation12 + $0xf8] sm:$0xff]
    %v1236 = vld [vmem:[#allocation12 + $0x100] sm:$0xff]
    %v1237 = vld [vmem:[#allocation12 + $0x108] sm:$0xff]
    %v1238 = vld [vmem:[#allocation12 + $0x110] sm:$0xff]
    %v1239 = vld [vmem:[#allocation12 + $0x118] sm:$0xff]
    %v1240 = vld [vmem:[#allocation12 + $0x120] sm:$0xff]
    %v1241 = vld [vmem:[#allocation12 + $0x128] sm:$0xff]
    %v1242 = vld [vmem:[#allocation12 + $0x130] sm:$0xff]
    %v1243 = vld [vmem:[#allocation12 + $0x138] sm:$0xff]
    %v1244 = vld [vmem:[#allocation12 + $0x140] sm:$0xff]
    %v1245 = vld [vmem:[#allocation12 + $0x148] sm:$0xff]
    %v1246 = vld [vmem:[#allocation12 + $0x150] sm:$0xff]
    %v1247 = vld [vmem:[#allocation12 + $0x158] sm:$0xff]
    %v1248 = vld [vmem:[#allocation12 + $0x160] sm:$0xff]
    %v1249 = vld [vmem:[#allocation12 + $0x168] sm:$0xff]
    %v1250 = vld [vmem:[#allocation12 + $0x170] sm:$0xff]
    %v1251 = vld [vmem:[#allocation12 + $0x178] sm:$0xff]
    %v1252 = vld [vmem:[#allocation12 + $0x180] sm:$0xff]
    %v1253 = vld [vmem:[#allocation12 + $0x188] sm:$0xff]
    %v1254 = vld [vmem:[#allocation12 + $0x190] sm:$0xff]
    %v1255 = vld [vmem:[#allocation12 + $0x198] sm:$0xff]
    %v1256 = vld [vmem:[#allocation12 + $0x1a0] sm:$0xff]
    %v1257 = vld [vmem:[#allocation12 + $0x1a8] sm:$0xff]
    %v1258 = vld [vmem:[#allocation12 + $0x1b0] sm:$0xff]
    %v1259 = vld [vmem:[#allocation12 + $0x1b8] sm:$0xff]
    %v1260 = vld [vmem:[#allocation12 + $0x1c0] sm:$0xff]
    %v1261 = vld [vmem:[#allocation12 + $0x1c8] sm:$0xff]
    %v1262 = vld [vmem:[#allocation12 + $0x1d0] sm:$0xff]
    %v1263 = vld [vmem:[#allocation12 + $0x1d8] sm:$0xff]
    %v1264 = vld [vmem:[#allocation12 + $0x1e0] sm:$0xff]
    %v1265 = vld [vmem:[#allocation12 + $0x1e8] sm:$0xff]
    %v1266 = vld [vmem:[#allocation12 + $0x1f0] sm:$0xff]
    %v1267 = vld [vmem:[#allocation12 + $0x1f8] sm:$0xff]
    %1268 = vmatprep.subr.mxu0 %v1205
    %1269 = vmatpush1.msra.mxu0 %v1204
    %1270 = vmatprep.subr.mxu0 %v1209
    %1271 = vmatpush1.msra.mxu0 %v1208
    %1272 = vmatprep.subr.mxu0 %v1213
    %1273 = vmatpush1.msra.mxu0 %v1212
    %1274 = vmatprep.subr.mxu0 %v1217
    %1275 = vmatpush1.msra.mxu0 %v1216
    %1276 = vmatprep.subr.mxu0 %v1221
    %1277 = vmatpush1.msra.mxu0 %v1220
    %1278 = vmatprep.subr.mxu0 %v1225
    %1279 = vmatpush1.msra.mxu0 %v1224
    %1280 = vmatprep.subr.mxu0 %v1229
    %1281 = vmatpush1.msra.mxu0 %v1228
    %1282 = vmatprep.subr.mxu0 %v1233
    %1283 = vmatpush1.msra.mxu0 %v1232
    %1284 = vmatprep.subr.mxu0 %v1237
    %1285 = vmatpush1.msra.mxu0 %v1236
    %1286 = vmatprep.subr.mxu0 %v1241
    %1287 = vmatpush1.msra.mxu0 %v1240
    %1288 = vmatprep.subr.mxu0 %v1245
    %1289 = vmatpush1.msra.mxu0 %v1244
    %1290 = vmatprep.subr.mxu0 %v1249
    %1291 = vmatpush1.msra.mxu0 %v1248
    %1292 = vmatprep.subr.mxu0 %v1253
    %1293 = vmatpush1.msra.mxu0 %v1252
    %1294 = vmatprep.subr.mxu0 %v1257
    %1295 = vmatpush1.msra.mxu0 %v1256
    %1296 = vmatprep.subr.mxu0 %v1261
    %1297 = vmatpush1.msra.mxu0 %v1260
    %1298 = vmatprep.subr.mxu0 %v1265
    %1299 = vmatpush1.msra.mxu0 %v1264
    %1300 = vmatprep.subr.mxu0 0.0
    %1301 = vmatpush1.msra.mxu0 0.0
    %1302 = vmatprep.subr.mxu0 0.0
    %1303 = vmatpush1.msra.mxu0 0.0
    %1304 = vmatprep.subr.mxu0 0.0
    %1305 = vmatpush1.msra.mxu0 0.0
    %1306 = vmatprep.subr.mxu0 0.0
    %1307 = vmatpush1.msra.mxu0 0.0
    %1308 = vmatprep.subr.mxu0 0.0
    %1309 = vmatpush1.msra.mxu0 0.0
    %1310 = vmatprep.subr.mxu0 0.0
    %1311 = vmatpush1.msra.mxu0 0.0
    %1312 = vmatprep.subr.mxu0 0.0
    %1313 = vmatpush1.msra.mxu0 0.0
    %1314 = vmatprep.subr.mxu0 0.0
    %1315 = vmatpush1.msra.mxu0 0.0
    %1316 = vmatprep.subr.mxu0 0.0
    %1317 = vmatpush1.msra.mxu0 0.0
    %1318 = vmatprep.subr.mxu0 0.0
    %1319 = vmatpush1.msra.mxu0 0.0
    %1320 = vmatprep.subr.mxu0 0.0
    %1321 = vmatpush1.msra.mxu0 0.0
    %1322 = vmatprep.subr.mxu0 0.0
    %1323 = vmatpush1.msra.mxu0 0.0
    %1324 = vmatprep.subr.mxu0 0.0
    %1325 = vmatpush1.msra.mxu0 0.0
    %1326 = vmatprep.subr.mxu0 0.0
    %1327 = vmatpush1.msra.mxu0 0.0
    %1328 = vmatprep.subr.mxu0 0.0
    %1329 = vmatpush1.msra.mxu0 0.0
    %1330 = vmatprep.subr.mxu0 0.0
    %1331 = vmatpush1.msra.mxu0 0.0
    %1332 = vmatprep.mubr.f32.mxu0 0.0
    %1333 = vmatmul.mubr.f32.gmra.mrb[0].mxu0 %v1202
    %v1334 = vpop.f32.mrb[0].mxu0
    %v1335 = vadd.f32 0.0, %v1334
    %v1336 = vpop.f32.mrb[0].mxu0
    %v1337 = vadd.f32 0.0, %v1336
    %1338 = vmatprep.mubr.f32.mxu0 0.0
    %1339 = vmatmul.mubr.f32.gmra.mrb[0].mxu0 %v1203
    %v1340 = vpop.f32.mrb[0].mxu0
    %v1341 = vadd.f32 0.0, %v1340
    %v1342 = vpop.f32.mrb[0].mxu0
    %v1343 = vadd.f32 0.0, %v1342
    %1344 = vdwg.mxu0
    %1345 = vmatprep.subr.mxu0 %v1207
    %1346 = vmatpush1.msra.mxu0 %v1206
    %1347 = vmatprep.subr.mxu0 %v1211
    %1348 = vmatpush1.msra.mxu0 %v1210
    %1349 = vmatprep.subr.mxu0 %v1215
    %1350 = vmatpush1.msra.mxu0 %v1214
    %1351 = vmatprep.subr.mxu0 %v1219
    %1352 = vmatpush1.msra.mxu0 %v1218
    %1353 = vmatprep.subr.mxu0 %v1223
    %1354 = vmatpush1.msra.mxu0 %v1222
    %1355 = vmatprep.subr.mxu0 %v1227
    %1356 = vmatpush1.msra.mxu0 %v1226
    %1357 = vmatprep.subr.mxu0 %v1231
    %1358 = vmatpush1.msra.mxu0 %v1230
    %1359 = vmatprep.subr.mxu0 %v1235
    %1360 = vmatpush1.msra.mxu0 %v1234
    %1361 = vmatprep.subr.mxu0 %v1239
    %1362 = vmatpush1.msra.mxu0 %v1238
    %1363 = vmatprep.subr.mxu0 %v1243
    %1364 = vmatpush1.msra.mxu0 %v1242
    %1365 = vmatprep.subr.mxu0 %v1247
    %1366 = vmatpush1.msra.mxu0 %v1246
    %1367 = vmatprep.subr.mxu0 %v1251
    %1368 = vmatpush1.msra.mxu0 %v1250
    %1369 = vmatprep.subr.mxu0 %v1255
    %1370 = vmatpush1.msra.mxu0 %v1254
    %1371 = vmatprep.subr.mxu0 %v1259
    %1372 = vmatpush1.msra.mxu0 %v1258
    %1373 = vmatprep.subr.mxu0 %v1263
    %1374 = vmatpush1.msra.mxu0 %v1262
    %1375 = vmatprep.subr.mxu0 %v1267
    %1376 = vmatpush1.msra.mxu0 %v1266
    %1377 = vmatprep.subr.mxu0 0.0
    %1378 = vmatpush1.msra.mxu0 0.0
    %1379 = vmatprep.subr.mxu0 0.0
    %1380 = vmatpush1.msra.mxu0 0.0
    %1381 = vmatprep.subr.mxu0 0.0
    %1382 = vmatpush1.msra.mxu0 0.0
    %1383 = vmatprep.subr.mxu0 0.0
    %1384 = vmatpush1.msra.mxu0 0.0
    %1385 = vmatprep.subr.mxu0 0.0
    %1386 = vmatpush1.msra.mxu0 0.0
    %1387 = vmatprep.subr.mxu0 0.0
    %1388 = vmatpush1.msra.mxu0 0.0
    %1389 = vmatprep.subr.mxu0 0.0
    %1390 = vmatpush1.msra.mxu0 0.0
    %1391 = vmatprep.subr.mxu0 0.0
    %1392 = vmatpush1.msra.mxu0 0.0
    %1393 = vmatprep.subr.mxu0 0.0
    %1394 = vmatpush1.msra.mxu0 0.0
    %1395 = vmatprep.subr.mxu0 0.0
    %1396 = vmatpush1.msra.mxu0 0.0
    %1397 = vmatprep.subr.mxu0 0.0
    %1398 = vmatpush1.msra.mxu0 0.0
    %1399 = vmatprep.subr.mxu0 0.0
    %1400 = vmatpush1.msra.mxu0 0.0
    %1401 = vmatprep.subr.mxu0 0.0
    %1402 = vmatpush1.msra.mxu0 0.0
    %1403 = vmatprep.subr.mxu0 0.0
    %1404 = vmatpush1.msra.mxu0 0.0
    %1405 = vmatprep.subr.mxu0 0.0
    %1406 = vmatpush1.msra.mxu0 0.0
    %1407 = vmatprep.subr.mxu0 0.0
    %1408 = vmatpush1.msra.mxu0 0.0
    %1409 = vmatprep.mubr.f32.mxu0 0.0
    %1410 = vmatmul.mubr.f32.gmra.mrb[0].mxu0 %v1202
    %v1411 = vpop.f32.mrb[0].mxu0
    %v1412 = vadd.f32 0.0, %v1411
    %v1413 = vpop.f32.mrb[0].mxu0
    %v1414 = vadd.f32 0.0, %v1413
    %1415 = vmatprep.mubr.f32.mxu0 0.0
    %1416 = vmatmul.mubr.f32.gmra.mrb[0].mxu0 %v1203
    %v1417 = vpop.f32.mrb[0].mxu0
    %v1418 = vadd.f32 0.0, %v1417
    %v1419 = vpop.f32.mrb[0].mxu0
    %v1420 = vadd.f32 0.0, %v1419
    %1421 = vdwg.mxu0
    %v1422 = vxor.u32 %v1335, 2147483648
    %v1423 = vxor.u32 %v1337, 2147483648
    %v1424 = vxor.u32 %v1341, 2147483648
    %v1425 = vxor.u32 %v1343, 2147483648
    %v1426 = vmul.f32 %v1422, 1.442695
    %v1427 = vpow.pop %v1426
    %v1428 = vmul.f32 %v1423, 1.442695
    %v1429 = vpow.pop %v1428
    %v1430 = vmul.f32 %v1424, 1.442695
    %v1431 = vpow.pop %v1430
    %v1432 = vmul.f32 %v1425, 1.442695
    %v1433 = vpow.pop %v1432
    %v1434 = vadd.f32 %v1427, 1.0
    %v1435 = vadd.f32 %v1429, 1.0
    %v1436 = vadd.f32 %v1431, 1.0
    %v1437 = vadd.f32 %v1433, 1.0
    %v1438 = vrcp.pop %v1434
    %v1439 = vmul.f32 1.0, %v1438
    %v1440 = vrcp.pop %v1435
    %v1441 = vmul.f32 1.0, %v1440
    %v1442 = vrcp.pop %v1436
    %v1443 = vmul.f32 1.0, %v1442
    %v1444 = vrcp.pop %v1437
    %v1445 = vmul.f32 1.0, %v1444
    %v1446 = vmul.f32 %v1335, %v1439
    %v1447 = vmul.f32 %v1337, %v1441
    %v1448 = vmul.f32 %v1341, %v1443
    %v1449 = vmul.f32 %v1343, %v1445
    %v1450 = vmul.f32 %v1446, %v1412
    %v1451 = vmul.f32 %v1447, %v1414
    %v1452 = vmul.f32 %v1448, %v1418
    %v1453 = vmul.f32 %v1449, %v1420
    %v1454 = vld [vmem:[%s11] sm:$0xff]
    %v1455 = vld [vmem:[%s11 + $0x8] sm:$0xff]
    %v1456 = vld [vmem:[%s11 + $0x10] sm:$0xff]
    %v1457 = vld [vmem:[%s11 + $0x18] sm:$0xff]
    %v1458 = vld [vmem:[%s11 + $0x20] sm:$0xff]
    %v1459 = vld [vmem:[%s11 + $0x28] sm:$0xff]
    %v1460 = vld [vmem:[%s11 + $0x30] sm:$0xff]
    %v1461 = vld [vmem:[%s11 + $0x38] sm:$0xff]
    %v1462 = vld [vmem:[%s11 + $0x40] sm:$0xff]
    %v1463 = vld [vmem:[%s11 + $0x48] sm:$0xff]
    %v1464 = vld [vmem:[%s11 + $0x50] sm:$0xff]
    %v1465 = vld [vmem:[%s11 + $0x58] sm:$0xff]
    %v1466 = vld [vmem:[%s11 + $0x60] sm:$0xff]
    %v1467 = vld [vmem:[%s11 + $0x68] sm:$0xff]
    %v1468 = vld [vmem:[%s11 + $0x70] sm:$0xff]
    %v1469 = vld [vmem:[%s11 + $0x78] sm:$0xff]
    %v1470 = vld [vmem:[%s11 + $0x80] sm:$0xff]
    %v1471 = vld [vmem:[%s11 + $0x88] sm:$0xff]
    %v1472 = vld [vmem:[%s11 + $0x90] sm:$0xff]
    %v1473 = vld [vmem:[%s11 + $0x98] sm:$0xff]
    %v1474 = vld [vmem:[%s11 + $0xa0] sm:$0xff]
    %v1475 = vld [vmem:[%s11 + $0xa8] sm:$0xff]
    %v1476 = vld [vmem:[%s11 + $0xb0] sm:$0xff]
    %v1477 = vld [vmem:[%s11 + $0xb8] sm:$0xff]
    %v1478 = vld [vmem:[%s11 + $0xc0] sm:$0xff]
    %v1479 = vld [vmem:[%s11 + $0xc8] sm:$0xff]
    %v1480 = vld [vmem:[%s11 + $0xd0] sm:$0xff]
    %v1481 = vld [vmem:[%s11 + $0xd8] sm:$0xff]
    %v1482 = vld [vmem:[%s11 + $0xe0] sm:$0xff]
    %v1483 = vld [vmem:[%s11 + $0xe8] sm:$0xff]
    %v1484 = vld [vmem:[%s11 + $0xf0] sm:$0xff]
    %v1485 = vld [vmem:[%s11 + $0xf8] sm:$0xff]
    %1486 = vmatprep.subr.mxu0 0.0
    %1487 = vmatpush1.msra.mxu0 %v1454
    %1488 = vmatprep.subr.mxu0 0.0
    %1489 = vmatpush1.msra.mxu0 %v1455
    %1490 = vmatprep.subr.mxu0 0.0
    %1491 = vmatpush1.msra.mxu0 %v1456
    %1492 = vmatprep.subr.mxu0 0.0
    %1493 = vmatpush1.msra.mxu0 %v1457
    %1494 = vmatprep.subr.mxu0 0.0
    %1495 = vmatpush1.msra.mxu0 %v1458
    %1496 = vmatprep.subr.mxu0 0.0
    %1497 = vmatpush1.msra.mxu0 %v1459
    %1498 = vmatprep.subr.mxu0 0.0
    %1499 = vmatpush1.msra.mxu0 %v1460
    %1500 = vmatprep.subr.mxu0 0.0
    %1501 = vmatpush1.msra.mxu0 %v1461
    %1502 = vmatprep.subr.mxu0 0.0
    %1503 = vmatpush1.msra.mxu0 %v1462
    %1504 = vmatprep.subr.mxu0 0.0
    %1505 = vmatpush1.msra.mxu0 %v1463
    %1506 = vmatprep.subr.mxu0 0.0
    %1507 = vmatpush1.msra.mxu0 %v1464
    %1508 = vmatprep.subr.mxu0 0.0
    %1509 = vmatpush1.msra.mxu0 %v1465
    %1510 = vmatprep.subr.mxu0 0.0
    %1511 = vmatpush1.msra.mxu0 %v1466
    %1512 = vmatprep.subr.mxu0 0.0
    %1513 = vmatpush1.msra.mxu0 %v1467
    %1514 = vmatprep.subr.mxu0 0.0
    %1515 = vmatpush1.msra.mxu0 %v1468
    %1516 = vmatprep.subr.mxu0 0.0
    %1517 = vmatpush1.msra.mxu0 %v1469
    %1518 = vmatprep.subr.mxu0 0.0
    %1519 = vmatpush1.msra.mxu0 %v1470
    %1520 = vmatprep.subr.mxu0 0.0
    %1521 = vmatpush1.msra.mxu0 %v1471
    %1522 = vmatprep.subr.mxu0 0.0
    %1523 = vmatpush1.msra.mxu0 %v1472
    %1524 = vmatprep.subr.mxu0 0.0
    %1525 = vmatpush1.msra.mxu0 %v1473
    %1526 = vmatprep.subr.mxu0 0.0
    %1527 = vmatpush1.msra.mxu0 %v1474
    %1528 = vmatprep.subr.mxu0 0.0
    %1529 = vmatpush1.msra.mxu0 %v1475
    %1530 = vmatprep.subr.mxu0 0.0
    %1531 = vmatpush1.msra.mxu0 %v1476
    %1532 = vmatprep.subr.mxu0 0.0
    %1533 = vmatpush1.msra.mxu0 %v1477
    %1534 = vmatprep.subr.mxu0 0.0
    %1535 = vmatpush1.msra.mxu0 %v1478
    %1536 = vmatprep.subr.mxu0 0.0
    %1537 = vmatpush1.msra.mxu0 %v1479
    %1538 = vmatprep.subr.mxu0 0.0
    %1539 = vmatpush1.msra.mxu0 %v1480
    %1540 = vmatprep.subr.mxu0 0.0
    %1541 = vmatpush1.msra.mxu0 %v1481
    %1542 = vmatprep.subr.mxu0 0.0
    %1543 = vmatpush1.msra.mxu0 %v1482
    %1544 = vmatprep.subr.mxu0 0.0
    %1545 = vmatpush1.msra.mxu0 %v1483
    %1546 = vmatprep.subr.mxu0 0.0
    %1547 = vmatpush1.msra.mxu0 %v1484
    %1548 = vmatprep.subr.mxu0 0.0
    %1549 = vmatpush1.msra.mxu0 %v1485
    %1550 = vmatprep.mubr.f32.mxu0 %v1451
    %1551 = vmatmul.mubr.f32.gmra.mrb[0].mxu0 %v1450
    %v1552 = vpop.f32.mrb[0].mxu0
    %v1553 = vadd.f32 0.0, %v1552
    %v1554 = vpop.f32.mrb[0].mxu0
    %1555 = vmatprep.mubr.f32.mxu0 %v1453
    %1556 = vmatmul.mubr.f32.gmra.mrb[0].mxu0 %v1452
    %v1557 = vpop.f32.mrb[0].mxu0
    %v1558 = vadd.f32 0.0, %v1557
    %v1559 = vpop.f32.mrb[0].mxu0
    %1560 = vdwg.mxu0
    %v1561 = vadd.f32 %v1179, %v1553
    %v1562 = vadd.f32 %v1180, %v1558
    %v1563 = vmul.f32 %v1561, %v1561
    %v1564 = vmul.f32 %v1562, %v1562
    %1565 = vadd.xlane.f32.xlu0 %v1563
    %v1566 = vpop.xlane.xlu0 %1565
    %1567 = vadd.xlane.f32.xlu0 %v1564
    %v1568 = vpop.xlane.xlu0 %1567
    %v1569 = vmul.f32 %v1566, %v552
    %v1570 = vmul.f32 %v1568, %v552
    %v1571 = vadd.f32 %v1569, 1e-06
    %v1572 = vadd.f32 %v1570, 1e-06
    %v1573 = vrsqrt.pop %v1571
    %v1574 = vrsqrt.pop %v1572
    %v1575 = vmul.f32 %v1561, %v1573
    %v1576 = vmul.f32 %v1562, %v1574
    %v1577 = vld [vmem:[#allocation17] sm:$0x1]
    %v1579 = vlaneseq
    %v1580 = vshrl.u32 %v1579, 7
    %v1581 = vsub.s32 0, %v1580
    %v1582 = vrot.slane %v1577, %v1581
    %v1584 = vmul.f32 %v1575, %v1582
    %v1585 = vmul.f32 %v1576, %v1582
    %v1588 = vrot.slane %v1585, 7
    %vm1591 = vcmask 130055
    %1592 = vst.msk [vmem:[#allocation22 - $0x7] sm:$0x80] %vm1591, %v1584
    %vm1593 = vcmask 122880
    %1594 = vst.msk [vmem:[#allocation22 + $0x1] sm:$0x1] %vm1593, %v1588
    %v1595 = vld [vmem:[#allocation18] sm:$0xff]
    %v1596 = vld [vmem:[#allocation18 + $0x8] sm:$0xff]
    %v1597 = vld [vmem:[#allocation20] sm:$0x1]
    %v1599 = vlaneseq
    %v1600 = vshrl.u32 %v1599, 7
    %v1601 = vsub.s32 0, %v1600
    %v1602 = vrot.slane %v1597, %v1601
    %v1604 = vrot.slane %v1584, 7
    %v1605 = vrot.slane %v1585, 6
    %v1606 = vsel %vm244, %v1605, %v1604
    %vm1607 = vcmask 130048
    %v1608 = vsel %vm1607, %v1606, 0
    %1610 = vmatprep.subr.mxu0 0.0
    %1611 = vmatpush1.msra.mxu0 %v1595
    %1612 = vmatprep.subr.mxu0 0.0
    %1613 = vmatpush1.msra.mxu0 %v1596
    %1614 = vmatprep.subr.mxu0 0.0
    %1615 = vmatpush1.msra.mxu0 0.0
    %1616 = vmatprep.subr.mxu0 0.0
    %1617 = vmatpush1.msra.mxu0 0.0
    %1618 = vmatprep.subr.mxu0 0.0
    %1619 = vmatpush1.msra.mxu0 0.0
    %1620 = vmatprep.subr.mxu0 0.0
    %1621 = vmatpush1.msra.mxu0 0.0
    %1622 = vmatprep.subr.mxu0 0.0
    %1623 = vmatpush1.msra.mxu0 0.0
    %1624 = vmatprep.subr.mxu0 0.0
    %1625 = vmatpush1.msra.mxu0 0.0
    %1626 = vmatprep.subr.mxu0 0.0
    %1627 = vmatpush1.msra.mxu0 0.0
    %1628 = vmatprep.subr.mxu0 0.0
    %1629 = vmatpush1.msra.mxu0 0.0
    %1630 = vmatprep.subr.mxu0 0.0
    %1631 = vmatpush1.msra.mxu0 0.0
    %1632 = vmatprep.subr.mxu0 0.0
    %1633 = vmatpush1.msra.mxu0 0.0
    %1634 = vmatprep.subr.mxu0 0.0
    %1635 = vmatpush1.msra.mxu0 0.0
    %1636 = vmatprep.subr.mxu0 0.0
    %1637 = vmatpush1.msra.mxu0 0.0
    %1638 = vmatprep.subr.mxu0 0.0
    %1639 = vmatpush1.msra.mxu0 0.0
    %1640 = vmatprep.subr.mxu0 0.0
    %1641 = vmatpush1.msra.mxu0 0.0
    %1642 = vmatprep.subr.mxu0 0.0
    %1643 = vmatpush1.msra.mxu0 0.0
    %1644 = vmatprep.subr.mxu0 0.0
    %1645 = vmatpush1.msra.mxu0 0.0
    %1646 = vmatprep.subr.mxu0 0.0
    %1647 = vmatpush1.msra.mxu0 0.0
    %1648 = vmatprep.subr.mxu0 0.0
    %1649 = vmatpush1.msra.mxu0 0.0
    %1650 = vmatprep.subr.mxu0 0.0
    %1651 = vmatpush1.msra.mxu0 0.0
    %1652 = vmatprep.subr.mxu0 0.0
    %1653 = vmatpush1.msra.mxu0 0.0
    %1654 = vmatprep.subr.mxu0 0.0
    %1655 = vmatpush1.msra.mxu0 0.0
    %1656 = vmatprep.subr.mxu0 0.0
    %1657 = vmatpush1.msra.mxu0 0.0
    %1658 = vmatprep.subr.mxu0 0.0
    %1659 = vmatpush1.msra.mxu0 0.0
    %1660 = vmatprep.subr.mxu0 0.0
    %1661 = vmatpush1.msra.mxu0 0.0
    %1662 = vmatprep.subr.mxu0 0.0
    %1663 = vmatpush1.msra.mxu0 0.0
    %1664 = vmatprep.subr.mxu0 0.0
    %1665 = vmatpush1.msra.mxu0 0.0
    %1666 = vmatprep.subr.mxu0 0.0
    %1667 = vmatpush1.msra.mxu0 0.0
    %1668 = vmatprep.subr.mxu0 0.0
    %1669 = vmatpush1.msra.mxu0 0.0
    %1670 = vmatprep.subr.mxu0 0.0
    %1671 = vmatpush1.msra.mxu0 0.0
    %1672 = vmatprep.subr.mxu0 0.0
    %1673 = vmatpush1.msra.mxu0 0.0
    %1674 = vmatprep.mubr.f32.mxu0 0.0
    %1675 = vmatmul.mubr.f32.gmra.mrb[0].mxu0 %v1608
    %v1676 = vpop.f32.mrb[0].mxu0
    %v1677 = vadd.f32 %v1602, %v1676
    %v1678 = vpop.f32.mrb[0].mxu0
    %1679 = vdwg.mxu0
    %1680 = vst [vmem:[#allocation21] sm:$0x3] %v1677
    // Predicated region
    $region114: #{respllm_forward.1} parent=1 // pred_check
      _
    $region115: #{respllm_forward.1} parent=1 // pred_check_branch
      %1682 = sbr.rel (0) target = $region117
    $region116: #{respllm_forward.1} parent=1 // pred_region
      %s1684 = ssub.s32 32, 32
      %1685 = vsyncadd [#allocation5], %s1684
      %s1687 = sshll.u32 [#allocation21], 4
      %s1688 = int_to_ptr.vmem [resolvable:$true] %s1687
      %1690 = dma.vmem_to_hbm [thread:$0]  %s1688, 32, %s17, [#allocation5]
    $region117: #{respllm_forward.1} parent=1 // pred_fallthru
      _
    // Predicated region
    $region118: #{respllm_forward.1} parent=1 // pred_check
      _
    $region119: #{respllm_forward.1} parent=1 // pred_check_branch
      %1692 = sbr.rel (0) target = $region121
    $region120: #{respllm_forward.1} parent=1 // pred_region
      %s1694 = ssub.s32 32, 32
      %1695 = vsyncadd [#allocation23], %s1694
      %s1697 = sshll.u32 [#allocation22], 4
      %s1698 = int_to_ptr.vmem [resolvable:$true] %s1697
      %1700 = dma.vmem_to_hbm [thread:$0]  %s1698, 32, %s18, [#allocation23]
    $region121: #{respllm_forward.1} parent=1 // pred_fallthru
      _
    // Predicated region
    $region122: #{respllm_forward.1} parent=1 // pred_check
      _
    $region123: #{respllm_forward.1} parent=1 // pred_check_branch
      %1702 = sbr.rel (0) target = $region125
    $region124: #{respllm_forward.1} parent=1 // pred_region
      %1703 = dma.done [#allocation5], 32
    $region125: #{respllm_forward.1} parent=1 // pred_fallthru
      _
    // Predicated region
    $region126: #{respllm_forward.1} parent=1 // pred_check
      _
    $region127: #{respllm_forward.1} parent=1 // pred_check_branch
      %1705 = sbr.rel (0) target = $region129
    $region128: #{respllm_forward.1} parent=1 // pred_region
      %1706 = dma.done [#allocation23], 32
    $region129: #{respllm_forward.1} parent=1 // pred_fallthru
      _
    %1707 = vsyncpa [#allocation4], 1
    %1708 = vsyncpa [#allocation7], 1
    %1709 = vsyncpa [#allocation10], 1
    %1710 = vsyncpa [#allocation13], 1
    %1711 = vsyncpa [#allocation16], 1
    %1712 = vsyncpa [#allocation19], 1
    %1713 = vsyncpa [#allocation5], 1
    %1714 = vsyncpa [#allocation23], 1

</llo_original>
